<compile_context>
chip_gen: v7x
topology: tpu7x:2x2x1
jax: 0.10.0
libtpu: 0.0.40
codegen_flags: <defaults>
</compile_context>

<pallas_src>
import numpy as np

import jax
import jax.numpy as jnp
from jax import lax
from jax.experimental import pallas as pl
from jax.experimental.pallas import tpu as pltpu


def _smoothing_matrix(n: int) -> np.ndarray:
    """1-D 3-tap average (stride 1, pad 1, count_include_pad=False) as a matrix."""
    a = np.zeros((n, n), np.float32)
    for i in range(n):
        lo, hi = max(0, i - 1), min(n, i + 2)
        a[i, lo:hi] = 1.0 / (hi - lo)     # 1/2 at borders, 1/3 interior
    return a


def _hownet_head_kernel(o_ref, wgt_ref, w_ref, b_ref, s_ref, feat_ref, g_ref):
    """One grid step == one image of the batch.

    o_ref:    (1,H,W,C) bf16  backbone feature map (NHWC block, channels on lanes)
    wgt_ref:  (1,1,H*W) f32   max-normalized L2-attention weights (lane-dense)
    w_ref:    (C,D)     bf16  ConvDimReduction 1x1 weight
    b_ref:    (1,D)     f32   ConvDimReduction bias
    s_ref:    (HW,HW)   f32   3x3 smoothing operator kron(A_H, A_W)
    feat_ref: (1,H,W,D) f32   smoothed + reduced feature map (output)
    g_ref:    (1,1,D)   f32   L2-normalized global descriptor (output)
    """
    _, H, W, C = o_ref.shape
    D = w_ref.shape[1]
    HW = H * W

    # ---- ConvDimReduction FIRST: 1x1 conv == (HW,C)@(C,D) bf16 MXU matmul.
    # The count_include_pad=False average pooling has weights summing to 1, so
    # it commutes exactly with the channel-wise conv + bias; smoothing after
    # the reduction (D=128 lanes instead of C=512) is algebraically identical
    # to the reference order.
    x = jnp.dot(o_ref[...].reshape(HW, C), w_ref[...],
                preferred_element_type=jnp.float32) + b_ref[...]         # (HW,D) f32

    # ---- SmoothingAvgPooling (3x3, stride 1, pad 1, count_include_pad=False)
    # as one constant linear operator on the MXU: no sublane shuffles, no
    # scratch, one unmasked lane-dense store of the result.
    feat = jnp.dot(s_ref[...], x, preferred_element_type=jnp.float32)     # (HW,D) f32
    feat_ref[...] = feat.reshape(1, H, W, D)

    # ---- mask-weighted spatial sum pooling (MXU) + L2 normalization.
    desc = jnp.dot(wgt_ref[...].reshape(1, HW), feat,
                   preferred_element_type=jnp.float32)                    # (1,D)
    nrm = jnp.sqrt(jnp.sum(desc * desc, axis=-1, keepdims=True))
    # matches torch reference: desc / (||desc||_2 + 1e-6)
    g_ref[...] = (desc / (nrm + 1e-6)).reshape(1, 1, D)


def hownet_head(o_nhwc, reduce_w, reduce_b):
    """o_nhwc: (B,H,W,C) f32 feature map; reduce_w: (C,D); reduce_b: (D,).

    Returns (global_desc (B,D), feat (B,H,W,D), mask (B,H,W)).
    """
    B, H, W, C = o_nhwc.shape
    D = reduce_w.shape[1]
    HW = H * W

    # ---- L2Attention + batch-GLOBAL max normalization (plain XLA).
    # Decoupled from the kernel so the kernel can grid over B with "parallel"
    # semantics (both TensorCores on v7x); the global max couples the batch.
    m = jnp.sqrt(jnp.sum(o_nhwc * o_nhwc, axis=-1))                        # (B,H,W)
    # Tiny clamp only to avoid inf/NaN on an identically-zero feature map
    # (where the PyTorch reference itself produces NaN); otherwise identical.
    inv_mx = 1.0 / jnp.maximum(jnp.max(m), 1e-12)
    mask = m * inv_mx                                                      # (B,H,W)

    smooth = jnp.asarray(np.kron(_smoothing_matrix(H), _smoothing_matrix(W)))

    # bf16 only for the MXU matmul operands (f32 accumulation); weights / bias /
    # smoothing matrix stay f32.
    feat, g3 = pl.pallas_call(
        _hownet_head_kernel,
        grid=(B,),
        out_shape=(
            jax.ShapeDtypeStruct((B, H, W, D), jnp.float32),   # reduced feature map
            jax.ShapeDtypeStruct((B, 1, D), jnp.float32),      # global descriptor
        ),
        in_specs=[
            pl.BlockSpec((1, H, W, C), lambda b: (b, 0, 0, 0)),
            pl.BlockSpec((1, 1, HW), lambda b: (b, 0, 0)),
            pl.BlockSpec((C, D), lambda b: (0, 0)),
            pl.BlockSpec((1, D), lambda b: (0, 0)),
            pl.BlockSpec((HW, HW), lambda b: (0, 0)),
        ],
        out_specs=(
            pl.BlockSpec((1, H, W, D), lambda b: (b, 0, 0, 0)),
            pl.BlockSpec((1, 1, D), lambda b: (b, 0, 0)),
        ),
        compiler_params=pltpu.CompilerParams(
            dimension_semantics=("parallel",)),
    )(
        o_nhwc.astype(jnp.bfloat16),
        mask.reshape(B, 1, HW).astype(jnp.float32),
        reduce_w.astype(jnp.bfloat16),
        reduce_b.reshape(1, D).astype(jnp.float32),
        smooth,
    )
    return g3.reshape(B, D), feat, mask


def hownet_forward(params, img):
    """img: (B, 3, Himg, Wimg) float32, NCHW — same input convention as PyTorch."""
    # TODO(synk): stand-in for the pretrained ResNet-18/50 trunk (`self.features`)
    # whose checkpoint cannot be reproduced here; a deterministic stride-4 conv +
    # ReLU produces the (B,16,16,512) map, emitted directly in NHWC so no
    # standalone XLA transpose precedes the kernel.
    o = lax.conv_general_dilated(
        img, params["backbone_w"], window_strides=(4, 4), padding="VALID",
        dimension_numbers=("NCHW", "OIHW", "NHWC"))
    o = jax.nn.relu(o + params["backbone_b"])                              # (B,H,W,512)

    g, feat_nhwc, mask = hownet_head(o, params["reduce_w"], params["reduce_b"])

    # The reference forward() shadows `feats` inside its loop, so the returned
    # 'feat' is feats[0] == the FIRST batch element's (D,H,W) map, while 'mask'
    # is the full normalized (B,H,W) tensor. Reproduced here; only that single
    # (H,W,D) slice is transposed back to channel-first.
    return {"global": g,
            "feat": jnp.transpose(feat_nhwc[0], (2, 0, 1)),
            "mask": mask}


def init_params(key, input_dim=512, out_dim=128):
    k1, k2, k3, k4 = jax.random.split(key, 4)
    return {
        # stand-in backbone: 4x4 stride-4 conv, 3 -> input_dim channels
        "backbone_w": 0.05 * jax.random.normal(k1, (input_dim, 3, 4, 4), jnp.float32),
        "backbone_b": 0.01 * jax.random.normal(k2, (input_dim,), jnp.float32),
        # ConvDimReduction(input_dim, 128, (1,1), bias=True); stored as
        # (C, D) == torch_weight[:, :, 0, 0].T, plus bias (D,)
        "reduce_w": 0.05 * jax.random.normal(k3, (input_dim, out_dim), jnp.float32),
        "reduce_b": 0.01 * jax.random.normal(k4, (out_dim,), jnp.float32),
    }


if __name__ == "__main__":
    key = jax.random.PRNGKey(0)
    pkey, xkey = jax.random.split(key)
    params = init_params(pkey, input_dim=512, out_dim=128)

    img = jax.random.normal(xkey, (2, 3, 64, 64), jnp.float32)   # batch['img'], NCHW

    fwd = jax.jit(hownet_forward)
    out = jax.block_until_ready(fwd(params, img))

    assert out["global"].shape == (2, 128) and out["global"].dtype == jnp.float32
    assert out["feat"].shape == (128, 16, 16)
    assert out["mask"].shape == (2, 16, 16)
    # global descriptors should be (approximately) unit-norm
    nrm = jnp.linalg.norm(out["global"], axis=1)
    assert bool(jnp.all(jnp.abs(nrm - 1.0) < 1e-3))
    # mask is max-normalized: max over the whole batch == 1
    assert bool(jnp.abs(jnp.max(out["mask"]) - 1.0) < 1e-5)

    print("KERNEL_OK")
</pallas_src>

<mosaic_0001>
module attributes {stable_mosaic.version = 11 : i64} {
  func.func @_hownet_head_kernel(%arg0: i32, %arg1: memref<1x16x16x512xbf16, #tpu.memory_space<vmem>>, %arg2: memref<1x1x256xf32, #tpu.memory_space<vmem>>, %arg3: memref<512x128xbf16, #tpu.memory_space<vmem>>, %arg4: memref<1x128xf32, #tpu.memory_space<vmem>>, %arg5: memref<256x256xf32, #tpu.memory_space<vmem>>, %arg6: memref<1x16x16x128xf32, #tpu.memory_space<vmem>>, %arg7: memref<1x1x128xf32, #tpu.memory_space<vmem>>) attributes {dimension_semantics = [#tpu.dimension_semantics<parallel>], iteration_bounds = array<i64: 2>, scalar_prefetch = 0 : i64, scratch_operands = 0 : i64, tpu.core_type = #tpu.core_type<tc>, window_params = [{transform_indices = @transform_0, window_bounds = array<i64: 1, 16, 16, 512>}, {transform_indices = @transform_1, window_bounds = array<i64: 1, 1, 256>}, {pipeline_mode = #tpu.pipeline_mode<synchronous>, transform_indices = @transform_2, window_bounds = array<i64: 512, 128>}, {pipeline_mode = #tpu.pipeline_mode<synchronous>, transform_indices = @transform_3, window_bounds = array<i64: 1, 128>}, {pipeline_mode = #tpu.pipeline_mode<synchronous>, transform_indices = @transform_4, window_bounds = array<i64: 256, 256>}, {transform_indices = @transform_5, window_bounds = array<i64: 1, 16, 16, 128>}, {transform_indices = @transform_6, window_bounds = array<i64: 1, 1, 128>}]} {
    %c0 = arith.constant 0 : index
    %c0_0 = arith.constant 0 : index
    %c0_1 = arith.constant 0 : index
    %c0_2 = arith.constant 0 : index
    %0 = vector.load %arg1[%c0, %c0_0, %c0_1, %c0_2] : memref<1x16x16x512xbf16, #tpu.memory_space<vmem>>, vector<1x16x16x512xbf16>
    %1 = vector.shape_cast %0 : vector<1x16x16x512xbf16> to vector<256x512xbf16>
    %c0_3 = arith.constant 0 : index
    %c0_4 = arith.constant 0 : index
    %2 = vector.load %arg3[%c0_3, %c0_4] : memref<512x128xbf16, #tpu.memory_space<vmem>>, vector<512x128xbf16>
    %cst = arith.constant dense<0.000000e+00> : vector<256x128xf32>
    %3 = tpu.matmul %1, %2, %cst {dimension_numbers = #tpu.dot_dimension_numbers<[1], [0], [0], [1], [0, 0, 1, 1], [], []>} : vector<256x512xbf16>, vector<512x128xbf16>, vector<256x128xf32> -> vector<256x128xf32>
    %c0_5 = arith.constant 0 : index
    %c0_6 = arith.constant 0 : index
    %4 = vector.load %arg4[%c0_5, %c0_6] : memref<1x128xf32, #tpu.memory_space<vmem>>, vector<1x128xf32>
    %5 = vector.broadcast %4 : vector<1x128xf32> to vector<256x128xf32>
    %6 = arith.addf %3, %5 : vector<256x128xf32>
    %c0_7 = arith.constant 0 : index
    %c0_8 = arith.constant 0 : index
    %7 = vector.load %arg5[%c0_7, %c0_8] : memref<256x256xf32, #tpu.memory_space<vmem>>, vector<256x256xf32>
    %cst_9 = arith.constant dense<0.000000e+00> : vector<256x128xf32>
    %8 = tpu.matmul %7, %6, %cst_9 {dimension_numbers = #tpu.dot_dimension_numbers<[1], [0], [0], [1], [0, 0, 1, 1], [], []>} : vector<256x256xf32>, vector<256x128xf32>, vector<256x128xf32> -> vector<256x128xf32>
    %9 = vector.shape_cast %8 : vector<256x128xf32> to vector<1x16x16x128xf32>
    %c0_10 = arith.constant 0 : index
    %c0_11 = arith.constant 0 : index
    %c0_12 = arith.constant 0 : index
    %c0_13 = arith.constant 0 : index
    %10 = vector.load %arg6[%c0_10, %c0_11, %c0_12, %c0_13] : memref<1x16x16x128xf32, #tpu.memory_space<vmem>>, vector<1x16x16x128xf32>
    tpu.vector_store %arg6[%c0_10, %c0_11, %c0_12, %c0_13], %9 {strides = array<i32>} : memref<1x16x16x128xf32, #tpu.memory_space<vmem>>, vector<1x16x16x128xf32>,
    %c0_14 = arith.constant 0 : index
    %c0_15 = arith.constant 0 : index
    %c0_16 = arith.constant 0 : index
    %11 = vector.load %arg2[%c0_14, %c0_15, %c0_16] : memref<1x1x256xf32, #tpu.memory_space<vmem>>, vector<1x1x256xf32>
    %12 = vector.shape_cast %11 : vector<1x1x256xf32> to vector<1x256xf32>
    %cst_17 = arith.constant dense<0.000000e+00> : vector<1x128xf32>
    %13 = tpu.matmul %12, %8, %cst_17 {dimension_numbers = #tpu.dot_dimension_numbers<[1], [0], [0], [1], [0, 0, 1, 1], [], []>} : vector<1x256xf32>, vector<256x128xf32>, vector<1x128xf32> -> vector<1x128xf32>
    %14 = arith.mulf %13, %13 : vector<1x128xf32>
    %cst_18 = arith.constant dense<0.000000e+00> : vector<1xf32>
    %15 = vector.multi_reduction <add>, %14, %cst_18 [1] : vector<1x128xf32> to vector<1xf32>
    %16 = vector.shape_cast %15 : vector<1xf32> to vector<1x1xf32>
    %17 = math.sqrt %16 : vector<1x1xf32>
    %cst_19 = arith.constant 9.99999997E-7 : f32
    %18 = vector.broadcast %cst_19 : f32 to vector<1x1xf32>
    %19 = arith.addf %17, %18 : vector<1x1xf32>
    %20 = vector.broadcast %19 : vector<1x1xf32> to vector<1x128xf32>
    %21 = arith.divf %13, %20 : vector<1x128xf32>
    %22 = vector.shape_cast %21 : vector<1x128xf32> to vector<1x1x128xf32>
    %c0_20 = arith.constant 0 : index
    %c0_21 = arith.constant 0 : index
    %c0_22 = arith.constant 0 : index
    %23 = vector.load %arg7[%c0_20, %c0_21, %c0_22] : memref<1x1x128xf32, #tpu.memory_space<vmem>>, vector<1x1x128xf32>
    tpu.vector_store %arg7[%c0_20, %c0_21, %c0_22], %22 {strides = array<i32>} : memref<1x1x128xf32, #tpu.memory_space<vmem>>, vector<1x1x128xf32>,
    return
  }
  func.func @transform_0(%arg0: i32) -> (i32, i32, i32, i32) {
    %c0_i32 = arith.constant 0 : i32
    %c0_i32_0 = arith.constant 0 : i32
    %c0_i32_1 = arith.constant 0 : i32
    %c0_i32_2 = arith.constant 0 : i32
    return %arg0, %c0_i32, %c0_i32_0, %c0_i32_1 : i32, i32, i32, i32
  }
  func.func @transform_1(%arg0: i32) -> (i32, i32, i32) {
    %c0_i32 = arith.constant 0 : i32
    %c0_i32_0 = arith.constant 0 : i32
    %c0_i32_1 = arith.constant 0 : i32
    return %arg0, %c0_i32, %c0_i32_0 : i32, i32, i32
  }
  func.func @transform_2(%arg0: i32) -> (i32, i32) {
    %c0_i32 = arith.constant 0 : i32
    %c0_i32_0 = arith.constant 0 : i32
    %c0_i32_1 = arith.constant 0 : i32
    return %c0_i32, %c0_i32_0 : i32, i32
  }
  func.func @transform_3(%arg0: i32) -> (i32, i32) {
    %c0_i32 = arith.constant 0 : i32
    %c0_i32_0 = arith.constant 0 : i32
    %c0_i32_1 = arith.constant 0 : i32
    return %c0_i32, %c0_i32_0 : i32, i32
  }
  func.func @transform_4(%arg0: i32) -> (i32, i32) {
    %c0_i32 = arith.constant 0 : i32
    %c0_i32_0 = arith.constant 0 : i32
    %c0_i32_1 = arith.constant 0 : i32
    return %c0_i32, %c0_i32_0 : i32, i32
  }
  func.func @transform_5(%arg0: i32) -> (i32, i32, i32, i32) {
    %c0_i32 = arith.constant 0 : i32
    %c0_i32_0 = arith.constant 0 : i32
    %c0_i32_1 = arith.constant 0 : i32
    %c0_i32_2 = arith.constant 0 : i32
    return %arg0, %c0_i32, %c0_i32_0, %c0_i32_1 : i32, i32, i32, i32
  }
  func.func @transform_6(%arg0: i32) -> (i32, i32, i32) {
    %c0_i32 = arith.constant 0 : i32
    %c0_i32_0 = arith.constant 0 : i32
    %c0_i32_1 = arith.constant 0 : i32
    return %arg0, %c0_i32, %c0_i32_0 : i32, i32, i32
  }
}

</mosaic_0001>

<llo_original>
// kernel: hownet_forward.1
$region0: #{hownet_forward.1}
  #allocation0 [shape = 'u32[]', space=smem, size = 0x4, offset = 0x4, fixed_abs, tag = 'smem constant byte address 0x4 - core index']
  #allocation1 [shape = 'u32[144,128]{1,0:T(1,128)}', space=vmem, size = 0x12000, scoped, tag = 'internal scratch']
  %s0 = inlined_call_operand.vmem [shape: bf16[2,16,16,512], index: 0, kind: input, shape index: {}]
  %s1 = inlined_call_operand.vmem [shape: f32[2,1,256], index: 1, kind: input, shape index: {}]
  %s2 = inlined_call_operand.vmem [shape: bf16[512,128], index: 2, kind: input, shape index: {}]
  %s3 = inlined_call_operand.vmem [shape: f32[1,128], index: 3, kind: input, shape index: {}]
  %s4 = inlined_call_operand.vmem [shape: f32[256,256], index: 4, kind: input, shape index: {}]
  %s5 = inlined_call_operand.vmem [shape: f32[2,16,16,128], index: 5, kind: output, shape index: {0}]
  %s6 = inlined_call_operand.hbm [shape: f32[2,1,128], index: 6, kind: output, shape index: {1}]
  %7 = xla_tuple %s5, %s6
  %s8 = sld [smem:[#allocation0]]
  $region61: #{hownet_forward.1} parent=0
    _
  %s10 = ssub.s32 1, %s8
  %s11 = scalar_select 0, %s10, %s8
  $region1: #{hownet_forward.1} parent=0
    #allocation2 [shape = 'u8[1024]{0}', space=vmem, size = 0x400, scoped, tag = 'output window, operand 1']
    #allocation3 [shape = 's32[2]{0}', space=sflag, size = 0x8, scoped, tag = 'scoped memory for hownet_forward.1']
    %12 = vsyncpa [#allocation3], 0
    %s13 = scalar_lea.sflag [#allocation3], 1
    %14 = vsyncpa %s13, 0
    loop: start=0, step=1, limit=4
    $region2: #{hownet_forward.1} parent=1 // loop_pre_header
      _
    $region3: #{hownet_forward.1} parent=1 // loop_header
      %s16 = sphi 0, %s20
      %p17 = scmp.ge.s32.totalorder %s16, 4
      %s26 = sphi 0, %s28
      %s29 = sphi 0, %s26
      %s30 = sphi 0, %s29
      %s46 = sphi 0, %s30
      %s52 = sphi 0, %s54
      %s55 = sphi 0, %s52
      %s56 = sphi 0, %s55
      %s72 = sphi 0, %s56
      %s76 = sphi 0, %s76
      %s78 = sphi 0, %s76
      %s79 = sphi 0, %s78
      %s93 = sphi 0, %s79
      %s97 = sphi 0, %s97
      %s99 = sphi 0, %s97
      %s100 = sphi 0, %s99
      %s114 = sphi 0, %s100
      %s118 = sphi 0, %s118
      %s120 = sphi 0, %s118
      %s121 = sphi 0, %s120
      %s135 = sphi 0, %s121
      %s141 = sphi 0, %s143
      %s144 = sphi 0, %s141
      %s145 = sphi 0, %s144
      %s161 = sphi 0, %s145
      %s167 = sphi 0, %s169
      %s170 = sphi 0, %s167
      %s171 = sphi 0, %s170
      %s187 = sphi 0, %s171
    $region4: #{hownet_forward.1} parent=1 // loop_header_branch
      %19 = sbr.rel (%p17) target = $region8
    $region5: #{hownet_forward.1} parent=1 // loop_body
      %s21 = ssub.s32 %s16, 1
      %s22 = ssub.s32 %s16, 2
      %s23 = sadd.s32 %s16, 1
      %s24 = ssub.s32 %s16, %s23
      %p25 = scmp.eq.s32.totalorder %s24, 0
      %s27 = sadd.s32 %s26, 1
      %s28 = scalar_select %p25, %s26, %s27
      %p31 = pneg %p25
      %p32 = scmp.eq.s32.totalorder %s16, 1
      %p33 = por %p31, %p32
      %p34 = scmp.ne.s32.totalorder %s26, %s29
      %p35 = scmp.eq.s32.totalorder %s16, 0
      %p36 = por %p34, %p35
      %p37 = scmp.ne.s32.totalorder %s26, %s29
      %p38 = scmp.eq.s32.totalorder %s21, 1
      %p39 = por %p37, %p38
      %p40 = scmp.ne.s32.totalorder %s29, %s30
      %p41 = scmp.eq.s32.totalorder %s21, 0
      %p42 = por %p40, %p41
      %p43 = scmp.ne.s32.totalorder %s29, %s30
      %p44 = scmp.eq.s32.totalorder %s22, 1
      %p45 = por %p43, %p44
      %p47 = scmp.ne.s32.totalorder %s30, %s46
      %p48 = scmp.eq.s32.totalorder %s22, 0
      %p49 = por %p47, %p48
      %s50 = ssub.s32 %s16, %s23
      %p51 = scmp.eq.s32.totalorder %s50, 0
      %s53 = sadd.s32 %s52, 1
      %s54 = scalar_select %p51, %s52, %s53
      %p57 = pneg %p51
      %p58 = scmp.eq.s32.totalorder %s16, 1
      %p59 = por %p57, %p58
      %p60 = scmp.ne.s32.totalorder %s52, %s55
      %p61 = scmp.eq.s32.totalorder %s16, 0
      %p62 = por %p60, %p61
      %p63 = scmp.ne.s32.totalorder %s52, %s55
      %p64 = scmp.eq.s32.totalorder %s21, 1
      %p65 = por %p63, %p64
      %p66 = scmp.ne.s32.totalorder %s55, %s56
      %p67 = scmp.eq.s32.totalorder %s21, 0
      %p68 = por %p66, %p67
      %p69 = scmp.ne.s32.totalorder %s55, %s56
      %p70 = scmp.eq.s32.totalorder %s22, 1
      %p71 = por %p69, %p70
      %p73 = scmp.ne.s32.totalorder %s56, %s72
      %p74 = scmp.eq.s32.totalorder %s22, 0
      %p75 = por %p73, %p74
      %s77 = sadd.s32 %s76, 1
      %p80 = scmp.eq.s32.totalorder %s16, 1
      %p81 = scmp.ne.s32.totalorder %s76, %s78
      %p82 = scmp.eq.s32.totalorder %s16, 0
      %p83 = por %p81, %p82
      %p84 = scmp.ne.s32.totalorder %s76, %s78
      %p85 = scmp.eq.s32.totalorder %s21, 1
      %p86 = por %p84, %p85
      %p87 = scmp.ne.s32.totalorder %s78, %s79
      %p88 = scmp.eq.s32.totalorder %s21, 0
      %p89 = por %p87, %p88
      %p90 = scmp.ne.s32.totalorder %s78, %s79
      %p91 = scmp.eq.s32.totalorder %s22, 1
      %p92 = por %p90, %p91
      %p94 = scmp.ne.s32.totalorder %s79, %s93
      %p95 = scmp.eq.s32.totalorder %s22, 0
      %p96 = por %p94, %p95
      %s98 = sadd.s32 %s97, 1
      %p101 = scmp.eq.s32.totalorder %s16, 1
      %p102 = scmp.ne.s32.totalorder %s97, %s99
      %p103 = scmp.eq.s32.totalorder %s16, 0
      %p104 = por %p102, %p103
      %p105 = scmp.ne.s32.totalorder %s97, %s99
      %p106 = scmp.eq.s32.totalorder %s21, 1
      %p107 = por %p105, %p106
      %p108 = scmp.ne.s32.totalorder %s99, %s100
      %p109 = scmp.eq.s32.totalorder %s21, 0
      %p110 = por %p108, %p109
      %p111 = scmp.ne.s32.totalorder %s99, %s100
      %p112 = scmp.eq.s32.totalorder %s22, 1
      %p113 = por %p111, %p112
      %p115 = scmp.ne.s32.totalorder %s100, %s114
      %p116 = scmp.eq.s32.totalorder %s22, 0
      %p117 = por %p115, %p116
      %s119 = sadd.s32 %s118, 1
      %p122 = scmp.eq.s32.totalorder %s16, 1
      %p123 = scmp.ne.s32.totalorder %s118, %s120
      %p124 = scmp.eq.s32.totalorder %s16, 0
      %p125 = por %p123, %p124
      %p126 = scmp.ne.s32.totalorder %s118, %s120
      %p127 = scmp.eq.s32.totalorder %s21, 1
      %p128 = por %p126, %p127
      %p129 = scmp.ne.s32.totalorder %s120, %s121
      %p130 = scmp.eq.s32.totalorder %s21, 0
      %p131 = por %p129, %p130
      %p132 = scmp.ne.s32.totalorder %s120, %s121
      %p133 = scmp.eq.s32.totalorder %s22, 1
      %p134 = por %p132, %p133
      %p136 = scmp.ne.s32.totalorder %s121, %s135
      %p137 = scmp.eq.s32.totalorder %s22, 0
      %p138 = por %p136, %p137
      %s139 = ssub.s32 %s16, %s23
      %p140 = scmp.eq.s32.totalorder %s139, 0
      %s142 = sadd.s32 %s141, 1
      %s143 = scalar_select %p140, %s141, %s142
      %p146 = pneg %p140
      %p147 = scmp.eq.s32.totalorder %s16, 1
      %p148 = por %p146, %p147
      %p149 = scmp.ne.s32.totalorder %s141, %s144
      %p150 = scmp.eq.s32.totalorder %s16, 0
      %p151 = por %p149, %p150
      %p152 = scmp.ne.s32.totalorder %s141, %s144
      %p153 = scmp.eq.s32.totalorder %s21, 1
      %p154 = por %p152, %p153
      %p155 = scmp.ne.s32.totalorder %s144, %s145
      %p156 = scmp.eq.s32.totalorder %s21, 0
      %p157 = por %p155, %p156
      %p158 = scmp.ne.s32.totalorder %s144, %s145
      %p159 = scmp.eq.s32.totalorder %s22, 1
      %p160 = por %p158, %p159
      %p162 = scmp.ne.s32.totalorder %s145, %s161
      %p163 = scmp.eq.s32.totalorder %s22, 0
      %p164 = por %p162, %p163
      %s165 = ssub.s32 %s16, %s23
      %p166 = scmp.eq.s32.totalorder %s165, 0
      %s168 = sadd.s32 %s167, 1
      %s169 = scalar_select %p166, %s167, %s168
      %p172 = pneg %p166
      %p173 = scmp.eq.s32.totalorder %s16, 1
      %p174 = por %p172, %p173
      %p175 = scmp.ne.s32.totalorder %s167, %s170
      %p176 = scmp.eq.s32.totalorder %s16, 0
      %p177 = por %p175, %p176
      %p178 = scmp.ne.s32.totalorder %s167, %s170
      %p179 = scmp.eq.s32.totalorder %s21, 1
      %p180 = por %p178, %p179
      %p181 = scmp.ne.s32.totalorder %s170, %s171
      %p182 = scmp.eq.s32.totalorder %s21, 0
      %p183 = por %p181, %p182
      %p184 = scmp.ne.s32.totalorder %s170, %s171
      %p185 = scmp.eq.s32.totalorder %s22, 1
      %p186 = por %p184, %p185
      %p188 = scmp.ne.s32.totalorder %s171, %s187
      %p189 = scmp.eq.s32.totalorder %s22, 0
      %p190 = por %p188, %p189
      %p191 = scmp.le.s32.totalorder 1, %s16
      %p192 = scmp.lt.s32.totalorder %s16, 3
      %p193 = pnand %p191, %p192
      %p194 = pneg %p193
      // Predicated region
      $region9: #{hownet_forward.1} parent=5 // pred_check
        _
      $region10: #{hownet_forward.1} parent=5 // pred_check_branch
        %196 = sbr.rel (%p193) target = $region12
      $region11: #{hownet_forward.1} parent=5 // pred_region
        %s197 = ssub.s32 %s16, 1
        // Predicated region
        $region13: #{hownet_forward.1} parent=11 // pred_check
          %p198 = pneg %p89
        $region14: #{hownet_forward.1} parent=11 // pred_check_branch
          %200 = sbr.rel (%p198) target = $region16
        $region15: #{hownet_forward.1} parent=11 // pred_region
          _
        $region16: #{hownet_forward.1} parent=11 // pred_fallthru
          _
        // Predicated region
        $region17: #{hownet_forward.1} parent=11 // pred_check
          %p201 = pneg %p110
        $region18: #{hownet_forward.1} parent=11 // pred_check_branch
          %203 = sbr.rel (%p201) target = $region20
        $region19: #{hownet_forward.1} parent=11 // pred_region
          _
        $region20: #{hownet_forward.1} parent=11 // pred_fallthru
          _
        // Predicated region
        $region21: #{hownet_forward.1} parent=11 // pred_check
          %p204 = pneg %p131
        $region22: #{hownet_forward.1} parent=11 // pred_check_branch
          %206 = sbr.rel (%p204) target = $region24
        $region23: #{hownet_forward.1} parent=11 // pred_region
          _
        $region24: #{hownet_forward.1} parent=11 // pred_fallthru
          _
      $region12: #{hownet_forward.1} parent=5 // pred_fallthru
        _
      %p207 = scmp.lt.s32.totalorder %s16, 2
      // Predicated region
      $region25: #{hownet_forward.1} parent=5 // pred_check
        %p208 = pneg %p207
      $region26: #{hownet_forward.1} parent=5 // pred_check_branch
        %210 = sbr.rel (%p208) target = $region28
      $region27: #{hownet_forward.1} parent=5 // pred_region
        // Predicated region
        $region29: #{hownet_forward.1} parent=27 // pred_check
          %p211 = pneg %p36
        $region30: #{hownet_forward.1} parent=27 // pred_check_branch
          %213 = sbr.rel (%p211) target = $region32
        $region31: #{hownet_forward.1} parent=27 // pred_region
          %p214 = scmp.lt.s32.totalorder %s16, 1
          %s215 = scalar_select %p214, %s16, 1
          %s216 = smul.addr %s215, 128
          %s217 = smul.addr %s216, 4
          %s218 = scalar_lea.vmem %s0, %s217
        $region32: #{hownet_forward.1} parent=27 // pred_fallthru
          _
        // Predicated region
        $region33: #{hownet_forward.1} parent=27 // pred_check
          %p219 = pneg %p62
        $region34: #{hownet_forward.1} parent=27 // pred_check_branch
          %221 = sbr.rel (%p219) target = $region36
        $region35: #{hownet_forward.1} parent=27 // pred_region
          %p222 = scmp.lt.s32.totalorder %s16, 1
          %s223 = scalar_select %p222, %s16, 1
          %s224 = smul.addr %s223, 2
          %s225 = scalar_lea.vmem %s1, %s224
        $region36: #{hownet_forward.1} parent=27 // pred_fallthru
          _
      $region28: #{hownet_forward.1} parent=5 // pred_fallthru
        _
      %p226 = scmp.le.s32.totalorder 1, %s16
      %p227 = scmp.lt.s32.totalorder %s16, 3
      %p228 = pnand %p226, %p227
      %p229 = pneg %p228
      // Predicated region
      $region37: #{hownet_forward.1} parent=5 // pred_check
        _
      $region38: #{hownet_forward.1} parent=5 // pred_check_branch
        %231 = sbr.rel (%p228) target = $region40
      $region39: #{hownet_forward.1} parent=5 // pred_region
        %s232 = ssub.s32 %s16, 1
        %p233 = scmp.lt.s32.totalorder %s21, 1
        %s234 = scalar_select %p233, %s21, 1
        %s235 = smul.addr %s234, 128
        %s236 = smul.addr %s235, 4
        %s237 = scalar_lea.vmem %s0, %s236
        %p238 = pneg %p42
        %p239 = pneg %p39
        %p240 = scmp.lt.s32.totalorder %s21, 1
        %s241 = scalar_select %p240, %s21, 1
        %s242 = smul.addr %s241, 2
        %s243 = scalar_lea.vmem %s1, %s242
        %p244 = pneg %p68
        %p245 = pneg %p65
        %p246 = pneg %p89
        %p247 = pneg %p86
        %p248 = pneg %p110
        %p249 = pneg %p107
        %p250 = pneg %p131
        %p251 = pneg %p128
        %p252 = pneg %p157
        %p253 = pneg %p154
        %p254 = scmp.lt.s32.totalorder %s21, 1
        %s255 = scalar_select %p254, %s21, 1
        %s256 = smul.addr %s255, 32
        %s257 = smul.addr %s256, 8
        %s258 = scalar_lea.vmem %s5, %s257
        %p259 = pneg %p183
        %p260 = pneg %p180
        %s261 = sand.u32 %s170, 1
        %s262 = scalar_lea.sflag [#allocation3], %s261
        %s263 = sand.u32 %s170, 1
        %s264 = scalar_lea.vmem [#allocation2], %s263
        %p265 = scmp.lt.s32.totalorder %s21, 1
        %s266 = scalar_select %p265, %s21, 1
        %s267 = smul.addr %s266, 128
        %s268 = smul.addr %s267, 4
        %s269 = scalar_lea.vmem %s0, %s268
        %p270 = scmp.lt.s32.totalorder %s21, 1
        %s271 = scalar_select %p270, %s21, 1
        %s272 = smul.addr %s271, 2
        %s273 = scalar_lea.vmem %s1, %s272
        %p274 = scmp.lt.s32.totalorder %s21, 1
        %s275 = scalar_select %p274, %s21, 1
        %s276 = smul.addr %s275, 32
        %s277 = smul.addr %s276, 8
        %s278 = scalar_lea.vmem %s5, %s277
        %v280 = vld [vmem:[%s269] sm:$0xff]
        %v281 = vld [vmem:[%s269 + $0x8] sm:$0xff]
        %v282 = vld [vmem:[%s269 + $0x10] sm:$0xff]
        %v283 = vld [vmem:[%s269 + $0x18] sm:$0xff]
        %v284 = vld [vmem:[%s269 + $0x20] sm:$0xff]
        %v285 = vld [vmem:[%s269 + $0x28] sm:$0xff]
        %v286 = vld [vmem:[%s269 + $0x30] sm:$0xff]
        %v287 = vld [vmem:[%s269 + $0x38] sm:$0xff]
        %v288 = vld [vmem:[%s269 + $0x40] sm:$0xff]
        %v289 = vld [vmem:[%s269 + $0x48] sm:$0xff]
        %v290 = vld [vmem:[%s269 + $0x50] sm:$0xff]
        %v291 = vld [vmem:[%s269 + $0x58] sm:$0xff]
        %v292 = vld [vmem:[%s269 + $0x60] sm:$0xff]
        %v293 = vld [vmem:[%s269 + $0x68] sm:$0xff]
        %v294 = vld [vmem:[%s269 + $0x70] sm:$0xff]
        %v295 = vld [vmem:[%s269 + $0x78] sm:$0xff]
        %v296 = vld [vmem:[%s269 + $0x80] sm:$0xff]
        %v297 = vld [vmem:[%s269 + $0x88] sm:$0xff]
        %v298 = vld [vmem:[%s269 + $0x90] sm:$0xff]
        %v299 = vld [vmem:[%s269 + $0x98] sm:$0xff]
        %v300 = vld [vmem:[%s269 + $0xa0] sm:$0xff]
        %v301 = vld [vmem:[%s269 + $0xa8] sm:$0xff]
        %v302 = vld [vmem:[%s269 + $0xb0] sm:$0xff]
        %v303 = vld [vmem:[%s269 + $0xb8] sm:$0xff]
        %v304 = vld [vmem:[%s269 + $0xc0] sm:$0xff]
        %v305 = vld [vmem:[%s269 + $0xc8] sm:$0xff]
        %v306 = vld [vmem:[%s269 + $0xd0] sm:$0xff]
        %v307 = vld [vmem:[%s269 + $0xd8] sm:$0xff]
        %v308 = vld [vmem:[%s269 + $0xe0] sm:$0xff]
        %v309 = vld [vmem:[%s269 + $0xe8] sm:$0xff]
        %v310 = vld [vmem:[%s269 + $0xf0] sm:$0xff]
        %v311 = vld [vmem:[%s269 + $0xf8] sm:$0xff]
        %v312 = vld [vmem:[%s269 + $0x100] sm:$0xff]
        %v313 = vld [vmem:[%s269 + $0x108] sm:$0xff]
        %v314 = vld [vmem:[%s269 + $0x110] sm:$0xff]
        %v315 = vld [vmem:[%s269 + $0x118] sm:$0xff]
        %v316 = vld [vmem:[%s269 + $0x120] sm:$0xff]
        %v317 = vld [vmem:[%s269 + $0x128] sm:$0xff]
        %v318 = vld [vmem:[%s269 + $0x130] sm:$0xff]
        %v319 = vld [vmem:[%s269 + $0x138] sm:$0xff]
        %v320 = vld [vmem:[%s269 + $0x140] sm:$0xff]
        %v321 = vld [vmem:[%s269 + $0x148] sm:$0xff]
        %v322 = vld [vmem:[%s269 + $0x150] sm:$0xff]
        %v323 = vld [vmem:[%s269 + $0x158] sm:$0xff]
        %v324 = vld [vmem:[%s269 + $0x160] sm:$0xff]
        %v325 = vld [vmem:[%s269 + $0x168] sm:$0xff]
        %v326 = vld [vmem:[%s269 + $0x170] sm:$0xff]
        %v327 = vld [vmem:[%s269 + $0x178] sm:$0xff]
        %v328 = vld [vmem:[%s269 + $0x180] sm:$0xff]
        %v329 = vld [vmem:[%s269 + $0x188] sm:$0xff]
        %v330 = vld [vmem:[%s269 + $0x190] sm:$0xff]
        %v331 = vld [vmem:[%s269 + $0x198] sm:$0xff]
        %v332 = vld [vmem:[%s269 + $0x1a0] sm:$0xff]
        %v333 = vld [vmem:[%s269 + $0x1a8] sm:$0xff]
        %v334 = vld [vmem:[%s269 + $0x1b0] sm:$0xff]
        %v335 = vld [vmem:[%s269 + $0x1b8] sm:$0xff]
        %v336 = vld [vmem:[%s269 + $0x1c0] sm:$0xff]
        %v337 = vld [vmem:[%s269 + $0x1c8] sm:$0xff]
        %v338 = vld [vmem:[%s269 + $0x1d0] sm:$0xff]
        %v339 = vld [vmem:[%s269 + $0x1d8] sm:$0xff]
        %v340 = vld [vmem:[%s269 + $0x1e0] sm:$0xff]
        %v341 = vld [vmem:[%s269 + $0x1e8] sm:$0xff]
        %v342 = vld [vmem:[%s269 + $0x1f0] sm:$0xff]
        %v343 = vld [vmem:[%s269 + $0x1f8] sm:$0xff]
        %v344 = vld [vmem:[%s2] sm:$0xf]
        %v345 = vld [vmem:[%s2 + $0x4] sm:$0xf]
        %v346 = vld [vmem:[%s2 + $0x8] sm:$0xf]
        %v347 = vld [vmem:[%s2 + $0xc] sm:$0xf]
        %v348 = vld [vmem:[%s2 + $0x10] sm:$0xf]
        %v349 = vld [vmem:[%s2 + $0x14] sm:$0xf]
        %v350 = vld [vmem:[%s2 + $0x18] sm:$0xf]
        %v351 = vld [vmem:[%s2 + $0x1c] sm:$0xf]
        %v352 = vld [vmem:[%s2 + $0x20] sm:$0xf]
        %v353 = vld [vmem:[%s2 + $0x24] sm:$0xf]
        %v354 = vld [vmem:[%s2 + $0x28] sm:$0xf]
        %v355 = vld [vmem:[%s2 + $0x2c] sm:$0xf]
        %v356 = vld [vmem:[%s2 + $0x30] sm:$0xf]
        %v357 = vld [vmem:[%s2 + $0x34] sm:$0xf]
        %v358 = vld [vmem:[%s2 + $0x38] sm:$0xf]
        %v359 = vld [vmem:[%s2 + $0x3c] sm:$0xf]
        %v360 = vld [vmem:[%s2 + $0x40] sm:$0xf]
        %v361 = vld [vmem:[%s2 + $0x44] sm:$0xf]
        %v362 = vld [vmem:[%s2 + $0x48] sm:$0xf]
        %v363 = vld [vmem:[%s2 + $0x4c] sm:$0xf]
        %v364 = vld [vmem:[%s2 + $0x50] sm:$0xf]
        %v365 = vld [vmem:[%s2 + $0x54] sm:$0xf]
        %v366 = vld [vmem:[%s2 + $0x58] sm:$0xf]
        %v367 = vld [vmem:[%s2 + $0x5c] sm:$0xf]
        %v368 = vld [vmem:[%s2 + $0x60] sm:$0xf]
        %v369 = vld [vmem:[%s2 + $0x64] sm:$0xf]
        %v370 = vld [vmem:[%s2 + $0x68] sm:$0xf]
        %v371 = vld [vmem:[%s2 + $0x6c] sm:$0xf]
        %v372 = vld [vmem:[%s2 + $0x70] sm:$0xf]
        %v373 = vld [vmem:[%s2 + $0x74] sm:$0xf]
        %v374 = vld [vmem:[%s2 + $0x78] sm:$0xf]
        %v375 = vld [vmem:[%s2 + $0x7c] sm:$0xf]
        %v376 = vld [vmem:[%s2 + $0x80] sm:$0xf]
        %v377 = vld [vmem:[%s2 + $0x84] sm:$0xf]
        %v378 = vld [vmem:[%s2 + $0x88] sm:$0xf]
        %v379 = vld [vmem:[%s2 + $0x8c] sm:$0xf]
        %v380 = vld [vmem:[%s2 + $0x90] sm:$0xf]
        %v381 = vld [vmem:[%s2 + $0x94] sm:$0xf]
        %v382 = vld [vmem:[%s2 + $0x98] sm:$0xf]
        %v383 = vld [vmem:[%s2 + $0x9c] sm:$0xf]
        %v384 = vld [vmem:[%s2 + $0xa0] sm:$0xf]
        %v385 = vld [vmem:[%s2 + $0xa4] sm:$0xf]
        %v386 = vld [vmem:[%s2 + $0xa8] sm:$0xf]
        %v387 = vld [vmem:[%s2 + $0xac] sm:$0xf]
        %v388 = vld [vmem:[%s2 + $0xb0] sm:$0xf]
        %v389 = vld [vmem:[%s2 + $0xb4] sm:$0xf]
        %v390 = vld [vmem:[%s2 + $0xb8] sm:$0xf]
        %v391 = vld [vmem:[%s2 + $0xbc] sm:$0xf]
        %v392 = vld [vmem:[%s2 + $0xc0] sm:$0xf]
        %v393 = vld [vmem:[%s2 + $0xc4] sm:$0xf]
        %v394 = vld [vmem:[%s2 + $0xc8] sm:$0xf]
        %v395 = vld [vmem:[%s2 + $0xcc] sm:$0xf]
        %v396 = vld [vmem:[%s2 + $0xd0] sm:$0xf]
        %v397 = vld [vmem:[%s2 + $0xd4] sm:$0xf]
        %v398 = vld [vmem:[%s2 + $0xd8] sm:$0xf]
        %v399 = vld [vmem:[%s2 + $0xdc] sm:$0xf]
        %v400 = vld [vmem:[%s2 + $0xe0] sm:$0xf]
        %v401 = vld [vmem:[%s2 + $0xe4] sm:$0xf]
        %v402 = vld [vmem:[%s2 + $0xe8] sm:$0xf]
        %v403 = vld [vmem:[%s2 + $0xec] sm:$0xf]
        %v404 = vld [vmem:[%s2 + $0xf0] sm:$0xf]
        %v405 = vld [vmem:[%s2 + $0xf4] sm:$0xf]
        %v406 = vld [vmem:[%s2 + $0xf8] sm:$0xf]
        %v407 = vld [vmem:[%s2 + $0xfc] sm:$0xf]
        %v408 = vld [vmem:[%s3] sm:$0x1]
        %v410 = vlaneseq
        %v411 = vshrl.u32 %v410, 7
        %v412 = vsub.s32 0, %v411
        %v413 = vrot.slane %v408, %v412
        %v479 = vunpack.c.l.b16 %v280
        %v480 = vunpack.c.h.b16 %v280
        %v481 = vunpack.c.l.b16 %v281
        %v482 = vunpack.c.h.b16 %v281
        %v483 = vunpack.c.l.b16 %v282
        %v484 = vunpack.c.h.b16 %v282
        %v485 = vunpack.c.l.b16 %v283
        %v486 = vunpack.c.h.b16 %v283
        %v487 = vunpack.c.l.b16 %v284
        %v488 = vunpack.c.h.b16 %v284
        %v489 = vunpack.c.l.b16 %v285
        %v490 = vunpack.c.h.b16 %v285
        %v491 = vunpack.c.l.b16 %v286
        %v492 = vunpack.c.h.b16 %v286
        %v493 = vunpack.c.l.b16 %v287
        %v494 = vunpack.c.h.b16 %v287
        %v495 = vunpack.c.l.b16 %v288
        %v496 = vunpack.c.h.b16 %v288
        %v497 = vunpack.c.l.b16 %v289
        %v498 = vunpack.c.h.b16 %v289
        %v499 = vunpack.c.l.b16 %v290
        %v500 = vunpack.c.h.b16 %v290
        %v501 = vunpack.c.l.b16 %v291
        %v502 = vunpack.c.h.b16 %v291
        %v503 = vunpack.c.l.b16 %v292
        %v504 = vunpack.c.h.b16 %v292
        %v505 = vunpack.c.l.b16 %v293
        %v506 = vunpack.c.h.b16 %v293
        %v507 = vunpack.c.l.b16 %v294
        %v508 = vunpack.c.h.b16 %v294
        %v509 = vunpack.c.l.b16 %v295
        %v510 = vunpack.c.h.b16 %v295
        %v511 = vunpack.c.l.b16 %v296
        %v512 = vunpack.c.h.b16 %v296
        %v513 = vunpack.c.l.b16 %v297
        %v514 = vunpack.c.h.b16 %v297
        %v515 = vunpack.c.l.b16 %v298
        %v516 = vunpack.c.h.b16 %v298
        %v517 = vunpack.c.l.b16 %v299
        %v518 = vunpack.c.h.b16 %v299
        %v519 = vunpack.c.l.b16 %v300
        %v520 = vunpack.c.h.b16 %v300
        %v521 = vunpack.c.l.b16 %v301
        %v522 = vunpack.c.h.b16 %v301
        %v523 = vunpack.c.l.b16 %v302
        %v524 = vunpack.c.h.b16 %v302
        %v525 = vunpack.c.l.b16 %v303
        %v526 = vunpack.c.h.b16 %v303
        %v527 = vunpack.c.l.b16 %v304
        %v528 = vunpack.c.h.b16 %v304
        %v529 = vunpack.c.l.b16 %v305
        %v530 = vunpack.c.h.b16 %v305
        %v531 = vunpack.c.l.b16 %v306
        %v532 = vunpack.c.h.b16 %v306
        %v533 = vunpack.c.l.b16 %v307
        %v534 = vunpack.c.h.b16 %v307
        %v535 = vunpack.c.l.b16 %v308
        %v536 = vunpack.c.h.b16 %v308
        %v537 = vunpack.c.l.b16 %v309
        %v538 = vunpack.c.h.b16 %v309
        %v539 = vunpack.c.l.b16 %v310
        %v540 = vunpack.c.h.b16 %v310
        %v541 = vunpack.c.l.b16 %v311
        %v542 = vunpack.c.h.b16 %v311
        %v543 = vunpack.c.l.b16 %v312
        %v544 = vunpack.c.h.b16 %v312
        %v545 = vunpack.c.l.b16 %v313
        %v546 = vunpack.c.h.b16 %v313
        %v547 = vunpack.c.l.b16 %v314
        %v548 = vunpack.c.h.b16 %v314
        %v549 = vunpack.c.l.b16 %v315
        %v550 = vunpack.c.h.b16 %v315
        %v551 = vunpack.c.l.b16 %v316
        %v552 = vunpack.c.h.b16 %v316
        %v553 = vunpack.c.l.b16 %v317
        %v554 = vunpack.c.h.b16 %v317
        %v555 = vunpack.c.l.b16 %v318
        %v556 = vunpack.c.h.b16 %v318
        %v557 = vunpack.c.l.b16 %v319
        %v558 = vunpack.c.h.b16 %v319
        %v559 = vunpack.c.l.b16 %v320
        %v560 = vunpack.c.h.b16 %v320
        %v561 = vunpack.c.l.b16 %v321
        %v562 = vunpack.c.h.b16 %v321
        %v563 = vunpack.c.l.b16 %v322
        %v564 = vunpack.c.h.b16 %v322
        %v565 = vunpack.c.l.b16 %v323
        %v566 = vunpack.c.h.b16 %v323
        %v567 = vunpack.c.l.b16 %v324
        %v568 = vunpack.c.h.b16 %v324
        %v569 = vunpack.c.l.b16 %v325
        %v570 = vunpack.c.h.b16 %v325
        %v571 = vunpack.c.l.b16 %v326
        %v572 = vunpack.c.h.b16 %v326
        %v573 = vunpack.c.l.b16 %v327
        %v574 = vunpack.c.h.b16 %v327
        %v575 = vunpack.c.l.b16 %v328
        %v576 = vunpack.c.h.b16 %v328
        %v577 = vunpack.c.l.b16 %v329
        %v578 = vunpack.c.h.b16 %v329
        %v579 = vunpack.c.l.b16 %v330
        %v580 = vunpack.c.h.b16 %v330
        %v581 = vunpack.c.l.b16 %v331
        %v582 = vunpack.c.h.b16 %v331
        %v583 = vunpack.c.l.b16 %v332
        %v584 = vunpack.c.h.b16 %v332
        %v585 = vunpack.c.l.b16 %v333
        %v586 = vunpack.c.h.b16 %v333
        %v587 = vunpack.c.l.b16 %v334
        %v588 = vunpack.c.h.b16 %v334
        %v589 = vunpack.c.l.b16 %v335
        %v590 = vunpack.c.h.b16 %v335
        %v591 = vunpack.c.l.b16 %v336
        %v592 = vunpack.c.h.b16 %v336
        %v593 = vunpack.c.l.b16 %v337
        %v594 = vunpack.c.h.b16 %v337
        %v595 = vunpack.c.l.b16 %v338
        %v596 = vunpack.c.h.b16 %v338
        %v597 = vunpack.c.l.b16 %v339
        %v598 = vunpack.c.h.b16 %v339
        %v599 = vunpack.c.l.b16 %v340
        %v600 = vunpack.c.h.b16 %v340
        %v601 = vunpack.c.l.b16 %v341
        %v602 = vunpack.c.h.b16 %v341
        %v603 = vunpack.c.l.b16 %v342
        %v604 = vunpack.c.h.b16 %v342
        %v605 = vunpack.c.l.b16 %v343
        %v606 = vunpack.c.h.b16 %v343
        %v607 = vpack.c.b16 %v483, %v479
        %v608 = vpack.c.b16 %v484, %v480
        %v609 = vpack.c.b16 %v485, %v481
        %v610 = vpack.c.b16 %v486, %v482
        %v611 = vpack.c.b16 %v491, %v487
        %v612 = vpack.c.b16 %v492, %v488
        %v613 = vpack.c.b16 %v493, %v489
        %v614 = vpack.c.b16 %v494, %v490
        %v615 = vpack.c.b16 %v499, %v495
        %v616 = vpack.c.b16 %v500, %v496
        %v617 = vpack.c.b16 %v501, %v497
        %v618 = vpack.c.b16 %v502, %v498
        %v619 = vpack.c.b16 %v507, %v503
        %v620 = vpack.c.b16 %v508, %v504
        %v621 = vpack.c.b16 %v509, %v505
        %v622 = vpack.c.b16 %v510, %v506
        %v623 = vpack.c.b16 %v515, %v511
        %v624 = vpack.c.b16 %v516, %v512
        %v625 = vpack.c.b16 %v517, %v513
        %v626 = vpack.c.b16 %v518, %v514
        %v627 = vpack.c.b16 %v523, %v519
        %v628 = vpack.c.b16 %v524, %v520
        %v629 = vpack.c.b16 %v525, %v521
        %v630 = vpack.c.b16 %v526, %v522
        %v631 = vpack.c.b16 %v531, %v527
        %v632 = vpack.c.b16 %v532, %v528
        %v633 = vpack.c.b16 %v533, %v529
        %v634 = vpack.c.b16 %v534, %v530
        %v635 = vpack.c.b16 %v539, %v535
        %v636 = vpack.c.b16 %v540, %v536
        %v637 = vpack.c.b16 %v541, %v537
        %v638 = vpack.c.b16 %v542, %v538
        %v639 = vpack.c.b16 %v547, %v543
        %v640 = vpack.c.b16 %v548, %v544
        %v641 = vpack.c.b16 %v549, %v545
        %v642 = vpack.c.b16 %v550, %v546
        %v643 = vpack.c.b16 %v555, %v551
        %v644 = vpack.c.b16 %v556, %v552
        %v645 = vpack.c.b16 %v557, %v553
        %v646 = vpack.c.b16 %v558, %v554
        %v647 = vpack.c.b16 %v563, %v559
        %v648 = vpack.c.b16 %v564, %v560
        %v649 = vpack.c.b16 %v565, %v561
        %v650 = vpack.c.b16 %v566, %v562
        %v651 = vpack.c.b16 %v571, %v567
        %v652 = vpack.c.b16 %v572, %v568
        %v653 = vpack.c.b16 %v573, %v569
        %v654 = vpack.c.b16 %v574, %v570
        %v655 = vpack.c.b16 %v579, %v575
        %v656 = vpack.c.b16 %v580, %v576
        %v657 = vpack.c.b16 %v581, %v577
        %v658 = vpack.c.b16 %v582, %v578
        %v659 = vpack.c.b16 %v587, %v583
        %v660 = vpack.c.b16 %v588, %v584
        %v661 = vpack.c.b16 %v589, %v585
        %v662 = vpack.c.b16 %v590, %v586
        %v663 = vpack.c.b16 %v595, %v591
        %v664 = vpack.c.b16 %v596, %v592
        %v665 = vpack.c.b16 %v597, %v593
        %v666 = vpack.c.b16 %v598, %v594
        %v667 = vpack.c.b16 %v603, %v599
        %v668 = vpack.c.b16 %v604, %v600
        %v669 = vpack.c.b16 %v605, %v601
        %v670 = vpack.c.b16 %v606, %v602
        %v799 = vunpack.c.l.b16 %v344
        %v800 = vunpack.c.l.b16 %v345
        %v801 = vunpack.c.l.b16 %v346
        %v802 = vunpack.c.l.b16 %v347
        %v803 = vunpack.c.l.b16 %v348
        %v804 = vunpack.c.l.b16 %v349
        %v805 = vunpack.c.l.b16 %v350
        %v806 = vunpack.c.l.b16 %v351
        %v807 = vunpack.c.l.b16 %v352
        %v808 = vunpack.c.l.b16 %v353
        %v809 = vunpack.c.l.b16 %v354
        %v810 = vunpack.c.l.b16 %v355
        %v811 = vunpack.c.l.b16 %v356
        %v812 = vunpack.c.l.b16 %v357
        %v813 = vunpack.c.l.b16 %v358
        %v814 = vunpack.c.l.b16 %v359
        %v815 = vunpack.c.l.b16 %v360
        %v816 = vunpack.c.l.b16 %v361
        %v817 = vunpack.c.l.b16 %v362
        %v818 = vunpack.c.l.b16 %v363
        %v819 = vunpack.c.l.b16 %v364
        %v820 = vunpack.c.l.b16 %v365
        %v821 = vunpack.c.l.b16 %v366
        %v822 = vunpack.c.l.b16 %v367
        %v823 = vunpack.c.l.b16 %v368
        %v824 = vunpack.c.l.b16 %v369
        %v825 = vunpack.c.l.b16 %v370
        %v826 = vunpack.c.l.b16 %v371
        %v827 = vunpack.c.l.b16 %v372
        %v828 = vunpack.c.l.b16 %v373
        %v829 = vunpack.c.l.b16 %v374
        %v830 = vunpack.c.l.b16 %v375
        %v831 = vunpack.c.l.b16 %v376
        %v832 = vunpack.c.l.b16 %v377
        %v833 = vunpack.c.l.b16 %v378
        %v834 = vunpack.c.l.b16 %v379
        %v835 = vunpack.c.l.b16 %v380
        %v836 = vunpack.c.l.b16 %v381
        %v837 = vunpack.c.l.b16 %v382
        %v838 = vunpack.c.l.b16 %v383
        %v839 = vunpack.c.l.b16 %v384
        %v840 = vunpack.c.l.b16 %v385
        %v841 = vunpack.c.l.b16 %v386
        %v842 = vunpack.c.l.b16 %v387
        %v843 = vunpack.c.l.b16 %v388
        %v844 = vunpack.c.l.b16 %v389
        %v845 = vunpack.c.l.b16 %v390
        %v846 = vunpack.c.l.b16 %v391
        %v847 = vunpack.c.l.b16 %v392
        %v848 = vunpack.c.l.b16 %v393
        %v849 = vunpack.c.l.b16 %v394
        %v850 = vunpack.c.l.b16 %v395
        %v851 = vunpack.c.l.b16 %v396
        %v852 = vunpack.c.l.b16 %v397
        %v853 = vunpack.c.l.b16 %v398
        %v854 = vunpack.c.l.b16 %v399
        %v855 = vunpack.c.l.b16 %v400
        %v856 = vunpack.c.l.b16 %v401
        %v857 = vunpack.c.l.b16 %v402
        %v858 = vunpack.c.l.b16 %v403
        %v859 = vunpack.c.l.b16 %v404
        %v860 = vunpack.c.l.b16 %v405
        %v861 = vunpack.c.l.b16 %v406
        %v862 = vunpack.c.l.b16 %v407
        %v863 = vpack.c.b16 %v800, %v799
        %v864 = vpack.c.b16 %v802, %v801
        %v865 = vpack.c.b16 %v804, %v803
        %v866 = vpack.c.b16 %v806, %v805
        %v867 = vpack.c.b16 %v808, %v807
        %v868 = vpack.c.b16 %v810, %v809
        %v869 = vpack.c.b16 %v812, %v811
        %v870 = vpack.c.b16 %v814, %v813
        %v871 = vpack.c.b16 %v816, %v815
        %v872 = vpack.c.b16 %v818, %v817
        %v873 = vpack.c.b16 %v820, %v819
        %v874 = vpack.c.b16 %v822, %v821
        %v875 = vpack.c.b16 %v824, %v823
        %v876 = vpack.c.b16 %v826, %v825
        %v877 = vpack.c.b16 %v828, %v827
        %v878 = vpack.c.b16 %v830, %v829
        %v879 = vpack.c.b16 %v832, %v831
        %v880 = vpack.c.b16 %v834, %v833
        %v881 = vpack.c.b16 %v836, %v835
        %v882 = vpack.c.b16 %v838, %v837
        %v883 = vpack.c.b16 %v840, %v839
        %v884 = vpack.c.b16 %v842, %v841
        %v885 = vpack.c.b16 %v844, %v843
        %v886 = vpack.c.b16 %v846, %v845
        %v887 = vpack.c.b16 %v848, %v847
        %v888 = vpack.c.b16 %v850, %v849
        %v889 = vpack.c.b16 %v852, %v851
        %v890 = vpack.c.b16 %v854, %v853
        %v891 = vpack.c.b16 %v856, %v855
        %v892 = vpack.c.b16 %v858, %v857
        %v893 = vpack.c.b16 %v860, %v859
        %v894 = vpack.c.b16 %v862, %v861
        %927 = vmatprep.subr.bf16.mxu0 0
        %928 = vmatpush1.bf16.msra.mxu0 %v863
        %929 = vmatprep.subr.bf16.mxu0 0
        %930 = vmatpush1.bf16.msra.mxu0 %v864
        %931 = vmatprep.subr.bf16.mxu0 0
        %932 = vmatpush1.bf16.msra.mxu0 %v865
        %933 = vmatprep.subr.bf16.mxu0 0
        %934 = vmatpush1.bf16.msra.mxu0 %v866
        %935 = vmatprep.subr.bf16.mxu0 0
        %936 = vmatpush1.bf16.msra.mxu0 %v867
        %937 = vmatprep.subr.bf16.mxu0 0
        %938 = vmatpush1.bf16.msra.mxu0 %v868
        %939 = vmatprep.subr.bf16.mxu0 0
        %940 = vmatpush1.bf16.msra.mxu0 %v869
        %941 = vmatprep.subr.bf16.mxu0 0
        %942 = vmatpush1.bf16.msra.mxu0 %v870
        %943 = vmatprep.subr.bf16.mxu0 0
        %944 = vmatpush1.bf16.msra.mxu0 %v871
        %945 = vmatprep.subr.bf16.mxu0 0
        %946 = vmatpush1.bf16.msra.mxu0 %v872
        %947 = vmatprep.subr.bf16.mxu0 0
        %948 = vmatpush1.bf16.msra.mxu0 %v873
        %949 = vmatprep.subr.bf16.mxu0 0
        %950 = vmatpush1.bf16.msra.mxu0 %v874
        %951 = vmatprep.subr.bf16.mxu0 0
        %952 = vmatpush1.bf16.msra.mxu0 %v875
        %953 = vmatprep.subr.bf16.mxu0 0
        %954 = vmatpush1.bf16.msra.mxu0 %v876
        %955 = vmatprep.subr.bf16.mxu0 0
        %956 = vmatpush1.bf16.msra.mxu0 %v877
        %957 = vmatprep.subr.bf16.mxu0 0
        %958 = vmatpush1.bf16.msra.mxu0 %v878
        %959 = vmatprep.mubr.bf16.mxu0 %v608
        %960 = vmatmul.mubr.bf16.gmra.mrb[0].mxu0 %v607
        %v961 = vpop.f32.mrb[0].mxu0
        %v962 = vadd.f32 %v413, %v961
        %v963 = vpop.f32.mrb[0].mxu0
        %v964 = vpop.f32.mrb[0].mxu0
        %v965 = vadd.f32 %v413, %v964
        %v966 = vpop.f32.mrb[0].mxu0
        %967 = vmatprep.mubr.bf16.mxu0 %v612
        %968 = vmatmul.mubr.bf16.gmra.mrb[0].mxu0 %v611
        %v969 = vpop.f32.mrb[0].mxu0
        %v970 = vadd.f32 %v413, %v969
        %v971 = vpop.f32.mrb[0].mxu0
        %v972 = vpop.f32.mrb[0].mxu0
        %v973 = vadd.f32 %v413, %v972
        %v974 = vpop.f32.mrb[0].mxu0
        %975 = vmatprep.mubr.bf16.mxu0 %v616
        %976 = vmatmul.mubr.bf16.gmra.mrb[0].mxu0 %v615
        %v977 = vpop.f32.mrb[0].mxu0
        %v978 = vadd.f32 %v413, %v977
        %v979 = vpop.f32.mrb[0].mxu0
        %v980 = vpop.f32.mrb[0].mxu0
        %v981 = vadd.f32 %v413, %v980
        %v982 = vpop.f32.mrb[0].mxu0
        %983 = vmatprep.mubr.bf16.mxu0 %v620
        %984 = vmatmul.mubr.bf16.gmra.mrb[0].mxu0 %v619
        %v985 = vpop.f32.mrb[0].mxu0
        %v986 = vadd.f32 %v413, %v985
        %v987 = vpop.f32.mrb[0].mxu0
        %v988 = vpop.f32.mrb[0].mxu0
        %v989 = vadd.f32 %v413, %v988
        %v990 = vpop.f32.mrb[0].mxu0
        %991 = vmatprep.mubr.bf16.mxu0 %v624
        %992 = vmatmul.mubr.bf16.gmra.mrb[0].mxu0 %v623
        %v993 = vpop.f32.mrb[0].mxu0
        %v994 = vadd.f32 %v413, %v993
        %v995 = vpop.f32.mrb[0].mxu0
        %v996 = vpop.f32.mrb[0].mxu0
        %v997 = vadd.f32 %v413, %v996
        %v998 = vpop.f32.mrb[0].mxu0
        %999 = vmatprep.mubr.bf16.mxu0 %v628
        %1000 = vmatmul.mubr.bf16.gmra.mrb[0].mxu0 %v627
        %v1001 = vpop.f32.mrb[0].mxu0
        %v1002 = vadd.f32 %v413, %v1001
        %v1003 = vpop.f32.mrb[0].mxu0
        %v1004 = vpop.f32.mrb[0].mxu0
        %v1005 = vadd.f32 %v413, %v1004
        %v1006 = vpop.f32.mrb[0].mxu0
        %1007 = vmatprep.mubr.bf16.mxu0 %v632
        %1008 = vmatmul.mubr.bf16.gmra.mrb[0].mxu0 %v631
        %v1009 = vpop.f32.mrb[0].mxu0
        %v1010 = vadd.f32 %v413, %v1009
        %v1011 = vpop.f32.mrb[0].mxu0
        %v1012 = vpop.f32.mrb[0].mxu0
        %v1013 = vadd.f32 %v413, %v1012
        %v1014 = vpop.f32.mrb[0].mxu0
        %1015 = vmatprep.mubr.bf16.mxu0 %v636
        %1016 = vmatmul.mubr.bf16.gmra.mrb[0].mxu0 %v635
        %v1017 = vpop.f32.mrb[0].mxu0
        %v1018 = vadd.f32 %v413, %v1017
        %v1019 = vpop.f32.mrb[0].mxu0
        %v1020 = vpop.f32.mrb[0].mxu0
        %v1021 = vadd.f32 %v413, %v1020
        %v1022 = vpop.f32.mrb[0].mxu0
        %1023 = vmatprep.mubr.bf16.mxu0 %v640
        %1024 = vmatmul.mubr.bf16.gmra.mrb[0].mxu0 %v639
        %v1025 = vpop.f32.mrb[0].mxu0
        %v1026 = vadd.f32 %v413, %v1025
        %v1027 = vpop.f32.mrb[0].mxu0
        %v1028 = vpop.f32.mrb[0].mxu0
        %v1029 = vadd.f32 %v413, %v1028
        %v1030 = vpop.f32.mrb[0].mxu0
        %1031 = vmatprep.mubr.bf16.mxu0 %v644
        %1032 = vmatmul.mubr.bf16.gmra.mrb[0].mxu0 %v643
        %v1033 = vpop.f32.mrb[0].mxu0
        %v1034 = vadd.f32 %v413, %v1033
        %v1035 = vpop.f32.mrb[0].mxu0
        %v1036 = vpop.f32.mrb[0].mxu0
        %v1037 = vadd.f32 %v413, %v1036
        %v1038 = vpop.f32.mrb[0].mxu0
        %1039 = vmatprep.mubr.bf16.mxu0 %v648
        %1040 = vmatmul.mubr.bf16.gmra.mrb[0].mxu0 %v647
        %v1041 = vpop.f32.mrb[0].mxu0
        %v1042 = vadd.f32 %v413, %v1041
        %v1043 = vpop.f32.mrb[0].mxu0
        %v1044 = vpop.f32.mrb[0].mxu0
        %v1045 = vadd.f32 %v413, %v1044
        %v1046 = vpop.f32.mrb[0].mxu0
        %1047 = vmatprep.mubr.bf16.mxu0 %v652
        %1048 = vmatmul.mubr.bf16.gmra.mrb[0].mxu0 %v651
        %v1049 = vpop.f32.mrb[0].mxu0
        %v1050 = vadd.f32 %v413, %v1049
        %v1051 = vpop.f32.mrb[0].mxu0
        %v1052 = vpop.f32.mrb[0].mxu0
        %v1053 = vadd.f32 %v413, %v1052
        %v1054 = vpop.f32.mrb[0].mxu0
        %1055 = vmatprep.mubr.bf16.mxu0 %v656
        %1056 = vmatmul.mubr.bf16.gmra.mrb[0].mxu0 %v655
        %v1057 = vpop.f32.mrb[0].mxu0
        %v1058 = vadd.f32 %v413, %v1057
        %v1059 = vpop.f32.mrb[0].mxu0
        %v1060 = vpop.f32.mrb[0].mxu0
        %v1061 = vadd.f32 %v413, %v1060
        %v1062 = vpop.f32.mrb[0].mxu0
        %1063 = vmatprep.mubr.bf16.mxu0 %v660
        %1064 = vmatmul.mubr.bf16.gmra.mrb[0].mxu0 %v659
        %v1065 = vpop.f32.mrb[0].mxu0
        %v1066 = vadd.f32 %v413, %v1065
        %v1067 = vpop.f32.mrb[0].mxu0
        %v1068 = vpop.f32.mrb[0].mxu0
        %v1069 = vadd.f32 %v413, %v1068
        %v1070 = vpop.f32.mrb[0].mxu0
        %1071 = vmatprep.mubr.bf16.mxu0 %v664
        %1072 = vmatmul.mubr.bf16.gmra.mrb[0].mxu0 %v663
        %v1073 = vpop.f32.mrb[0].mxu0
        %v1074 = vadd.f32 %v413, %v1073
        %v1075 = vpop.f32.mrb[0].mxu0
        %v1076 = vpop.f32.mrb[0].mxu0
        %v1077 = vadd.f32 %v413, %v1076
        %v1078 = vpop.f32.mrb[0].mxu0
        %1079 = vmatprep.mubr.bf16.mxu0 %v668
        %1080 = vmatmul.mubr.bf16.gmra.mrb[0].mxu0 %v667
        %v1081 = vpop.f32.mrb[0].mxu0
        %v1082 = vadd.f32 %v413, %v1081
        %v1083 = vpop.f32.mrb[0].mxu0
        %v1084 = vpop.f32.mrb[0].mxu0
        %v1085 = vadd.f32 %v413, %v1084
        %v1086 = vpop.f32.mrb[0].mxu0
        %1087 = vdwg.mxu0
        %1088 = vmatprep.subr.bf16.mxu0 0
        %1089 = vmatpush1.bf16.msra.mxu0 %v879
        %1090 = vmatprep.subr.bf16.mxu0 0
        %1091 = vmatpush1.bf16.msra.mxu0 %v880
        %1092 = vmatprep.subr.bf16.mxu0 0
        %1093 = vmatpush1.bf16.msra.mxu0 %v881
        %1094 = vmatprep.subr.bf16.mxu0 0
        %1095 = vmatpush1.bf16.msra.mxu0 %v882
        %1096 = vmatprep.subr.bf16.mxu0 0
        %1097 = vmatpush1.bf16.msra.mxu0 %v883
        %1098 = vmatprep.subr.bf16.mxu0 0
        %1099 = vmatpush1.bf16.msra.mxu0 %v884
        %1100 = vmatprep.subr.bf16.mxu0 0
        %1101 = vmatpush1.bf16.msra.mxu0 %v885
        %1102 = vmatprep.subr.bf16.mxu0 0
        %1103 = vmatpush1.bf16.msra.mxu0 %v886
        %1104 = vmatprep.subr.bf16.mxu0 0
        %1105 = vmatpush1.bf16.msra.mxu0 %v887
        %1106 = vmatprep.subr.bf16.mxu0 0
        %1107 = vmatpush1.bf16.msra.mxu0 %v888
        %1108 = vmatprep.subr.bf16.mxu0 0
        %1109 = vmatpush1.bf16.msra.mxu0 %v889
        %1110 = vmatprep.subr.bf16.mxu0 0
        %1111 = vmatpush1.bf16.msra.mxu0 %v890
        %1112 = vmatprep.subr.bf16.mxu0 0
        %1113 = vmatpush1.bf16.msra.mxu0 %v891
        %1114 = vmatprep.subr.bf16.mxu0 0
        %1115 = vmatpush1.bf16.msra.mxu0 %v892
        %1116 = vmatprep.subr.bf16.mxu0 0
        %1117 = vmatpush1.bf16.msra.mxu0 %v893
        %1118 = vmatprep.subr.bf16.mxu0 0
        %1119 = vmatpush1.bf16.msra.mxu0 %v894
        %1120 = vmatprep.mubr.bf16.mxu0 %v610
        %1121 = vmatmul.mubr.bf16.gmra.mrb[0].mxu0 %v609
        %v1122 = vpop.f32.mrb[0].mxu0
        %v1123 = vadd.f32 %v962, %v1122
        %v1124 = vpop.f32.mrb[0].mxu0
        %v1125 = vpop.f32.mrb[0].mxu0
        %v1126 = vadd.f32 %v965, %v1125
        %v1127 = vpop.f32.mrb[0].mxu0
        %1128 = vmatprep.mubr.bf16.mxu0 %v614
        %1129 = vmatmul.mubr.bf16.gmra.mrb[0].mxu0 %v613
        %v1130 = vpop.f32.mrb[0].mxu0
        %v1131 = vadd.f32 %v970, %v1130
        %v1132 = vpop.f32.mrb[0].mxu0
        %v1133 = vpop.f32.mrb[0].mxu0
        %v1134 = vadd.f32 %v973, %v1133
        %v1135 = vpop.f32.mrb[0].mxu0
        %1136 = vmatprep.mubr.bf16.mxu0 %v618
        %1137 = vmatmul.mubr.bf16.gmra.mrb[0].mxu0 %v617
        %v1138 = vpop.f32.mrb[0].mxu0
        %v1139 = vadd.f32 %v978, %v1138
        %v1140 = vpop.f32.mrb[0].mxu0
        %v1141 = vpop.f32.mrb[0].mxu0
        %v1142 = vadd.f32 %v981, %v1141
        %v1143 = vpop.f32.mrb[0].mxu0
        %1144 = vmatprep.mubr.bf16.mxu0 %v622
        %1145 = vmatmul.mubr.bf16.gmra.mrb[0].mxu0 %v621
        %v1146 = vpop.f32.mrb[0].mxu0
        %v1147 = vadd.f32 %v986, %v1146
        %v1148 = vpop.f32.mrb[0].mxu0
        %v1149 = vpop.f32.mrb[0].mxu0
        %v1150 = vadd.f32 %v989, %v1149
        %v1151 = vpop.f32.mrb[0].mxu0
        %1152 = vmatprep.mubr.bf16.mxu0 %v626
        %1153 = vmatmul.mubr.bf16.gmra.mrb[0].mxu0 %v625
        %v1154 = vpop.f32.mrb[0].mxu0
        %v1155 = vadd.f32 %v994, %v1154
        %v1156 = vpop.f32.mrb[0].mxu0
        %v1157 = vpop.f32.mrb[0].mxu0
        %v1158 = vadd.f32 %v997, %v1157
        %v1159 = vpop.f32.mrb[0].mxu0
        %1160 = vmatprep.mubr.bf16.mxu0 %v630
        %1161 = vmatmul.mubr.bf16.gmra.mrb[0].mxu0 %v629
        %v1162 = vpop.f32.mrb[0].mxu0
        %v1163 = vadd.f32 %v1002, %v1162
        %v1164 = vpop.f32.mrb[0].mxu0
        %v1165 = vpop.f32.mrb[0].mxu0
        %v1166 = vadd.f32 %v1005, %v1165
        %v1167 = vpop.f32.mrb[0].mxu0
        %1168 = vmatprep.mubr.bf16.mxu0 %v634
        %1169 = vmatmul.mubr.bf16.gmra.mrb[0].mxu0 %v633
        %v1170 = vpop.f32.mrb[0].mxu0
        %v1171 = vadd.f32 %v1010, %v1170
        %v1172 = vpop.f32.mrb[0].mxu0
        %v1173 = vpop.f32.mrb[0].mxu0
        %v1174 = vadd.f32 %v1013, %v1173
        %v1175 = vpop.f32.mrb[0].mxu0
        %1176 = vmatprep.mubr.bf16.mxu0 %v638
        %1177 = vmatmul.mubr.bf16.gmra.mrb[0].mxu0 %v637
        %v1178 = vpop.f32.mrb[0].mxu0
        %v1179 = vadd.f32 %v1018, %v1178
        %v1180 = vpop.f32.mrb[0].mxu0
        %v1181 = vpop.f32.mrb[0].mxu0
        %v1182 = vadd.f32 %v1021, %v1181
        %v1183 = vpop.f32.mrb[0].mxu0
        %1184 = vmatprep.mubr.bf16.mxu0 %v642
        %1185 = vmatmul.mubr.bf16.gmra.mrb[0].mxu0 %v641
        %v1186 = vpop.f32.mrb[0].mxu0
        %v1187 = vadd.f32 %v1026, %v1186
        %v1188 = vpop.f32.mrb[0].mxu0
        %v1189 = vpop.f32.mrb[0].mxu0
        %v1190 = vadd.f32 %v1029, %v1189
        %v1191 = vpop.f32.mrb[0].mxu0
        %1192 = vmatprep.mubr.bf16.mxu0 %v646
        %1193 = vmatmul.mubr.bf16.gmra.mrb[0].mxu0 %v645
        %v1194 = vpop.f32.mrb[0].mxu0
        %v1195 = vadd.f32 %v1034, %v1194
        %v1196 = vpop.f32.mrb[0].mxu0
        %v1197 = vpop.f32.mrb[0].mxu0
        %v1198 = vadd.f32 %v1037, %v1197
        %v1199 = vpop.f32.mrb[0].mxu0
        %1200 = vmatprep.mubr.bf16.mxu0 %v650
        %1201 = vmatmul.mubr.bf16.gmra.mrb[0].mxu0 %v649
        %v1202 = vpop.f32.mrb[0].mxu0
        %v1203 = vadd.f32 %v1042, %v1202
        %v1204 = vpop.f32.mrb[0].mxu0
        %v1205 = vpop.f32.mrb[0].mxu0
        %v1206 = vadd.f32 %v1045, %v1205
        %v1207 = vpop.f32.mrb[0].mxu0
        %1208 = vmatprep.mubr.bf16.mxu0 %v654
        %1209 = vmatmul.mubr.bf16.gmra.mrb[0].mxu0 %v653
        %v1210 = vpop.f32.mrb[0].mxu0
        %v1211 = vadd.f32 %v1050, %v1210
        %v1212 = vpop.f32.mrb[0].mxu0
        %v1213 = vpop.f32.mrb[0].mxu0
        %v1214 = vadd.f32 %v1053, %v1213
        %v1215 = vpop.f32.mrb[0].mxu0
        %1216 = vmatprep.mubr.bf16.mxu0 %v658
        %1217 = vmatmul.mubr.bf16.gmra.mrb[0].mxu0 %v657
        %v1218 = vpop.f32.mrb[0].mxu0
        %v1219 = vadd.f32 %v1058, %v1218
        %v1220 = vpop.f32.mrb[0].mxu0
        %v1221 = vpop.f32.mrb[0].mxu0
        %v1222 = vadd.f32 %v1061, %v1221
        %v1223 = vpop.f32.mrb[0].mxu0
        %1224 = vmatprep.mubr.bf16.mxu0 %v662
        %1225 = vmatmul.mubr.bf16.gmra.mrb[0].mxu0 %v661
        %v1226 = vpop.f32.mrb[0].mxu0
        %v1227 = vadd.f32 %v1066, %v1226
        %v1228 = vpop.f32.mrb[0].mxu0
        %v1229 = vpop.f32.mrb[0].mxu0
        %v1230 = vadd.f32 %v1069, %v1229
        %v1231 = vpop.f32.mrb[0].mxu0
        %1232 = vmatprep.mubr.bf16.mxu0 %v666
        %1233 = vmatmul.mubr.bf16.gmra.mrb[0].mxu0 %v665
        %v1234 = vpop.f32.mrb[0].mxu0
        %v1235 = vadd.f32 %v1074, %v1234
        %v1236 = vpop.f32.mrb[0].mxu0
        %v1237 = vpop.f32.mrb[0].mxu0
        %v1238 = vadd.f32 %v1077, %v1237
        %v1239 = vpop.f32.mrb[0].mxu0
        %1240 = vmatprep.mubr.bf16.mxu0 %v670
        %1241 = vmatmul.mubr.bf16.gmra.mrb[0].mxu0 %v669
        %v1242 = vpop.f32.mrb[0].mxu0
        %v1243 = vadd.f32 %v1082, %v1242
        %v1244 = vpop.f32.mrb[0].mxu0
        %v1245 = vpop.f32.mrb[0].mxu0
        %v1246 = vadd.f32 %v1085, %v1245
        %v1247 = vpop.f32.mrb[0].mxu0
        %1248 = vdwg.mxu0
        %v1249 = vld [vmem:[%s4] sm:$0xff]
        %v1250 = vld [vmem:[%s4 + $0x8] sm:$0xff]
        %v1251 = vld [vmem:[%s4 + $0x10] sm:$0xff]
        %v1252 = vld [vmem:[%s4 + $0x18] sm:$0xff]
        %v1253 = vld [vmem:[%s4 + $0x20] sm:$0xff]
        %v1254 = vld [vmem:[%s4 + $0x28] sm:$0xff]
        %v1255 = vld [vmem:[%s4 + $0x30] sm:$0xff]
        %v1256 = vld [vmem:[%s4 + $0x38] sm:$0xff]
        %v1257 = vld [vmem:[%s4 + $0x40] sm:$0xff]
        %v1258 = vld [vmem:[%s4 + $0x48] sm:$0xff]
        %v1259 = vld [vmem:[%s4 + $0x50] sm:$0xff]
        %v1260 = vld [vmem:[%s4 + $0x58] sm:$0xff]
        %v1261 = vld [vmem:[%s4 + $0x60] sm:$0xff]
        %v1262 = vld [vmem:[%s4 + $0x68] sm:$0xff]
        %v1263 = vld [vmem:[%s4 + $0x70] sm:$0xff]
        %v1264 = vld [vmem:[%s4 + $0x78] sm:$0xff]
        %v1265 = vld [vmem:[%s4 + $0x80] sm:$0xff]
        %v1266 = vld [vmem:[%s4 + $0x88] sm:$0xff]
        %v1267 = vld [vmem:[%s4 + $0x90] sm:$0xff]
        %v1268 = vld [vmem:[%s4 + $0x98] sm:$0xff]
        %v1269 = vld [vmem:[%s4 + $0xa0] sm:$0xff]
        %v1270 = vld [vmem:[%s4 + $0xa8] sm:$0xff]
        %v1271 = vld [vmem:[%s4 + $0xb0] sm:$0xff]
        %v1272 = vld [vmem:[%s4 + $0xb8] sm:$0xff]
        %v1273 = vld [vmem:[%s4 + $0xc0] sm:$0xff]
        %v1274 = vld [vmem:[%s4 + $0xc8] sm:$0xff]
        %v1275 = vld [vmem:[%s4 + $0xd0] sm:$0xff]
        %v1276 = vld [vmem:[%s4 + $0xd8] sm:$0xff]
        %v1277 = vld [vmem:[%s4 + $0xe0] sm:$0xff]
        %v1278 = vld [vmem:[%s4 + $0xe8] sm:$0xff]
        %v1279 = vld [vmem:[%s4 + $0xf0] sm:$0xff]
        %v1280 = vld [vmem:[%s4 + $0xf8] sm:$0xff]
        %v1281 = vld [vmem:[%s4 + $0x100] sm:$0xff]
        %v1282 = vld [vmem:[%s4 + $0x108] sm:$0xff]
        %v1283 = vld [vmem:[%s4 + $0x110] sm:$0xff]
        %v1284 = vld [vmem:[%s4 + $0x118] sm:$0xff]
        %v1285 = vld [vmem:[%s4 + $0x120] sm:$0xff]
        %v1286 = vld [vmem:[%s4 + $0x128] sm:$0xff]
        %v1287 = vld [vmem:[%s4 + $0x130] sm:$0xff]
        %v1288 = vld [vmem:[%s4 + $0x138] sm:$0xff]
        %v1289 = vld [vmem:[%s4 + $0x140] sm:$0xff]
        %v1290 = vld [vmem:[%s4 + $0x148] sm:$0xff]
        %v1291 = vld [vmem:[%s4 + $0x150] sm:$0xff]
        %v1292 = vld [vmem:[%s4 + $0x158] sm:$0xff]
        %v1293 = vld [vmem:[%s4 + $0x160] sm:$0xff]
        %v1294 = vld [vmem:[%s4 + $0x168] sm:$0xff]
        %v1295 = vld [vmem:[%s4 + $0x170] sm:$0xff]
        %v1296 = vld [vmem:[%s4 + $0x178] sm:$0xff]
        %v1297 = vld [vmem:[%s4 + $0x180] sm:$0xff]
        %v1298 = vld [vmem:[%s4 + $0x188] sm:$0xff]
        %v1299 = vld [vmem:[%s4 + $0x190] sm:$0xff]
        %v1300 = vld [vmem:[%s4 + $0x198] sm:$0xff]
        %v1301 = vld [vmem:[%s4 + $0x1a0] sm:$0xff]
        %v1302 = vld [vmem:[%s4 + $0x1a8] sm:$0xff]
        %v1303 = vld [vmem:[%s4 + $0x1b0] sm:$0xff]
        %v1304 = vld [vmem:[%s4 + $0x1b8] sm:$0xff]
        %v1305 = vld [vmem:[%s4 + $0x1c0] sm:$0xff]
        %v1306 = vld [vmem:[%s4 + $0x1c8] sm:$0xff]
        %v1307 = vld [vmem:[%s4 + $0x1d0] sm:$0xff]
        %v1308 = vld [vmem:[%s4 + $0x1d8] sm:$0xff]
        %v1309 = vld [vmem:[%s4 + $0x1e0] sm:$0xff]
        %v1310 = vld [vmem:[%s4 + $0x1e8] sm:$0xff]
        %v1311 = vld [vmem:[%s4 + $0x1f0] sm:$0xff]
        %v1312 = vld [vmem:[%s4 + $0x1f8] sm:$0xff]
        %1313 = vmatprep.subr.mxu0 0.0
        %1314 = vmatpush1.msra.mxu0 %v1123
        %1315 = vmatprep.subr.mxu0 0.0
        %1316 = vmatpush1.msra.mxu0 %v1126
        %1317 = vmatprep.subr.mxu0 0.0
        %1318 = vmatpush1.msra.mxu0 %v1131
        %1319 = vmatprep.subr.mxu0 0.0
        %1320 = vmatpush1.msra.mxu0 %v1134
        %1321 = vmatprep.subr.mxu0 0.0
        %1322 = vmatpush1.msra.mxu0 %v1139
        %1323 = vmatprep.subr.mxu0 0.0
        %1324 = vmatpush1.msra.mxu0 %v1142
        %1325 = vmatprep.subr.mxu0 0.0
        %1326 = vmatpush1.msra.mxu0 %v1147
        %1327 = vmatprep.subr.mxu0 0.0
        %1328 = vmatpush1.msra.mxu0 %v1150
        %1329 = vmatprep.subr.mxu0 0.0
        %1330 = vmatpush1.msra.mxu0 %v1155
        %1331 = vmatprep.subr.mxu0 0.0
        %1332 = vmatpush1.msra.mxu0 %v1158
        %1333 = vmatprep.subr.mxu0 0.0
        %1334 = vmatpush1.msra.mxu0 %v1163
        %1335 = vmatprep.subr.mxu0 0.0
        %1336 = vmatpush1.msra.mxu0 %v1166
        %1337 = vmatprep.subr.mxu0 0.0
        %1338 = vmatpush1.msra.mxu0 %v1171
        %1339 = vmatprep.subr.mxu0 0.0
        %1340 = vmatpush1.msra.mxu0 %v1174
        %1341 = vmatprep.subr.mxu0 0.0
        %1342 = vmatpush1.msra.mxu0 %v1179
        %1343 = vmatprep.subr.mxu0 0.0
        %1344 = vmatpush1.msra.mxu0 %v1182
        %1345 = vmatprep.subr.mxu0 0.0
        %1346 = vmatpush1.msra.mxu0 %v1187
        %1347 = vmatprep.subr.mxu0 0.0
        %1348 = vmatpush1.msra.mxu0 %v1190
        %1349 = vmatprep.subr.mxu0 0.0
        %1350 = vmatpush1.msra.mxu0 %v1195
        %1351 = vmatprep.subr.mxu0 0.0
        %1352 = vmatpush1.msra.mxu0 %v1198
        %1353 = vmatprep.subr.mxu0 0.0
        %1354 = vmatpush1.msra.mxu0 %v1203
        %1355 = vmatprep.subr.mxu0 0.0
        %1356 = vmatpush1.msra.mxu0 %v1206
        %1357 = vmatprep.subr.mxu0 0.0
        %1358 = vmatpush1.msra.mxu0 %v1211
        %1359 = vmatprep.subr.mxu0 0.0
        %1360 = vmatpush1.msra.mxu0 %v1214
        %1361 = vmatprep.subr.mxu0 0.0
        %1362 = vmatpush1.msra.mxu0 %v1219
        %1363 = vmatprep.subr.mxu0 0.0
        %1364 = vmatpush1.msra.mxu0 %v1222
        %1365 = vmatprep.subr.mxu0 0.0
        %1366 = vmatpush1.msra.mxu0 %v1227
        %1367 = vmatprep.subr.mxu0 0.0
        %1368 = vmatpush1.msra.mxu0 %v1230
        %1369 = vmatprep.subr.mxu0 0.0
        %1370 = vmatpush1.msra.mxu0 %v1235
        %1371 = vmatprep.subr.mxu0 0.0
        %1372 = vmatpush1.msra.mxu0 %v1238
        %1373 = vmatprep.subr.mxu0 0.0
        %1374 = vmatpush1.msra.mxu0 %v1243
        %1375 = vmatprep.subr.mxu0 0.0
        %1376 = vmatpush1.msra.mxu0 %v1246
        %1377 = vmatprep.mubr.f32.mxu0 %v1250
        %1378 = vmatmul.mubr.f32.gmra.mrb[0].mxu0 %v1249
        %v1379 = vpop.f32.mrb[0].mxu0
        %v1380 = vadd.f32 0.0, %v1379
        %v1381 = vpop.f32.mrb[0].mxu0
        %1382 = vmatprep.mubr.f32.mxu0 %v1252
        %1383 = vmatmul.mubr.f32.gmra.mrb[0].mxu0 %v1251
        %v1384 = vpop.f32.mrb[0].mxu0
        %v1385 = vadd.f32 0.0, %v1384
        %v1386 = vpop.f32.mrb[0].mxu0
        %1387 = vmatprep.mubr.f32.mxu0 %v1254
        %1388 = vmatmul.mubr.f32.gmra.mrb[0].mxu0 %v1253
        %v1389 = vpop.f32.mrb[0].mxu0
        %v1390 = vadd.f32 0.0, %v1389
        %v1391 = vpop.f32.mrb[0].mxu0
        %1392 = vmatprep.mubr.f32.mxu0 %v1256
        %1393 = vmatmul.mubr.f32.gmra.mrb[0].mxu0 %v1255
        %v1394 = vpop.f32.mrb[0].mxu0
        %v1395 = vadd.f32 0.0, %v1394
        %v1396 = vpop.f32.mrb[0].mxu0
        %1397 = vmatprep.mubr.f32.mxu0 %v1258
        %1398 = vmatmul.mubr.f32.gmra.mrb[0].mxu0 %v1257
        %v1399 = vpop.f32.mrb[0].mxu0
        %v1400 = vadd.f32 0.0, %v1399
        %v1401 = vpop.f32.mrb[0].mxu0
        %1402 = vmatprep.mubr.f32.mxu0 %v1260
        %1403 = vmatmul.mubr.f32.gmra.mrb[0].mxu0 %v1259
        %v1404 = vpop.f32.mrb[0].mxu0
        %v1405 = vadd.f32 0.0, %v1404
        %v1406 = vpop.f32.mrb[0].mxu0
        %1407 = vmatprep.mubr.f32.mxu0 %v1262
        %1408 = vmatmul.mubr.f32.gmra.mrb[0].mxu0 %v1261
        %v1409 = vpop.f32.mrb[0].mxu0
        %v1410 = vadd.f32 0.0, %v1409
        %v1411 = vpop.f32.mrb[0].mxu0
        %1412 = vmatprep.mubr.f32.mxu0 %v1264
        %1413 = vmatmul.mubr.f32.gmra.mrb[0].mxu0 %v1263
        %v1414 = vpop.f32.mrb[0].mxu0
        %v1415 = vadd.f32 0.0, %v1414
        %v1416 = vpop.f32.mrb[0].mxu0
        %1417 = vmatprep.mubr.f32.mxu0 %v1266
        %1418 = vmatmul.mubr.f32.gmra.mrb[0].mxu0 %v1265
        %v1419 = vpop.f32.mrb[0].mxu0
        %v1420 = vadd.f32 0.0, %v1419
        %v1421 = vpop.f32.mrb[0].mxu0
        %1422 = vmatprep.mubr.f32.mxu0 %v1268
        %1423 = vmatmul.mubr.f32.gmra.mrb[0].mxu0 %v1267
        %v1424 = vpop.f32.mrb[0].mxu0
        %v1425 = vadd.f32 0.0, %v1424
        %v1426 = vpop.f32.mrb[0].mxu0
        %1427 = vmatprep.mubr.f32.mxu0 %v1270
        %1428 = vmatmul.mubr.f32.gmra.mrb[0].mxu0 %v1269
        %v1429 = vpop.f32.mrb[0].mxu0
        %v1430 = vadd.f32 0.0, %v1429
        %v1431 = vpop.f32.mrb[0].mxu0
        %1432 = vmatprep.mubr.f32.mxu0 %v1272
        %1433 = vmatmul.mubr.f32.gmra.mrb[0].mxu0 %v1271
        %v1434 = vpop.f32.mrb[0].mxu0
        %v1435 = vadd.f32 0.0, %v1434
        %v1436 = vpop.f32.mrb[0].mxu0
        %1437 = vmatprep.mubr.f32.mxu0 %v1274
        %1438 = vmatmul.mubr.f32.gmra.mrb[0].mxu0 %v1273
        %v1439 = vpop.f32.mrb[0].mxu0
        %v1440 = vadd.f32 0.0, %v1439
        %v1441 = vpop.f32.mrb[0].mxu0
        %1442 = vmatprep.mubr.f32.mxu0 %v1276
        %1443 = vmatmul.mubr.f32.gmra.mrb[0].mxu0 %v1275
        %v1444 = vpop.f32.mrb[0].mxu0
        %v1445 = vadd.f32 0.0, %v1444
        %v1446 = vpop.f32.mrb[0].mxu0
        %1447 = vmatprep.mubr.f32.mxu0 %v1278
        %1448 = vmatmul.mubr.f32.gmra.mrb[0].mxu0 %v1277
        %v1449 = vpop.f32.mrb[0].mxu0
        %v1450 = vadd.f32 0.0, %v1449
        %v1451 = vpop.f32.mrb[0].mxu0
        %1452 = vmatprep.mubr.f32.mxu0 %v1280
        %1453 = vmatmul.mubr.f32.gmra.mrb[0].mxu0 %v1279
        %v1454 = vpop.f32.mrb[0].mxu0
        %v1455 = vadd.f32 0.0, %v1454
        %v1456 = vpop.f32.mrb[0].mxu0
        %1457 = vmatprep.mubr.f32.mxu0 %v1282
        %1458 = vmatmul.mubr.f32.gmra.mrb[0].mxu0 %v1281
        %v1459 = vpop.f32.mrb[0].mxu0
        %v1460 = vadd.f32 0.0, %v1459
        %v1461 = vpop.f32.mrb[0].mxu0
        %1462 = vmatprep.mubr.f32.mxu0 %v1284
        %1463 = vmatmul.mubr.f32.gmra.mrb[0].mxu0 %v1283
        %v1464 = vpop.f32.mrb[0].mxu0
        %v1465 = vadd.f32 0.0, %v1464
        %v1466 = vpop.f32.mrb[0].mxu0
        %1467 = vmatprep.mubr.f32.mxu0 %v1286
        %1468 = vmatmul.mubr.f32.gmra.mrb[0].mxu0 %v1285
        %v1469 = vpop.f32.mrb[0].mxu0
        %v1470 = vadd.f32 0.0, %v1469
        %v1471 = vpop.f32.mrb[0].mxu0
        %1472 = vmatprep.mubr.f32.mxu0 %v1288
        %1473 = vmatmul.mubr.f32.gmra.mrb[0].mxu0 %v1287
        %v1474 = vpop.f32.mrb[0].mxu0
        %v1475 = vadd.f32 0.0, %v1474
        %v1476 = vpop.f32.mrb[0].mxu0
        %1477 = vmatprep.mubr.f32.mxu0 %v1290
        %1478 = vmatmul.mubr.f32.gmra.mrb[0].mxu0 %v1289
        %v1479 = vpop.f32.mrb[0].mxu0
        %v1480 = vadd.f32 0.0, %v1479
        %v1481 = vpop.f32.mrb[0].mxu0
        %1482 = vmatprep.mubr.f32.mxu0 %v1292
        %1483 = vmatmul.mubr.f32.gmra.mrb[0].mxu0 %v1291
        %v1484 = vpop.f32.mrb[0].mxu0
        %v1485 = vadd.f32 0.0, %v1484
        %v1486 = vpop.f32.mrb[0].mxu0
        %1487 = vmatprep.mubr.f32.mxu0 %v1294
        %1488 = vmatmul.mubr.f32.gmra.mrb[0].mxu0 %v1293
        %v1489 = vpop.f32.mrb[0].mxu0
        %v1490 = vadd.f32 0.0, %v1489
        %v1491 = vpop.f32.mrb[0].mxu0
        %1492 = vmatprep.mubr.f32.mxu0 %v1296
        %1493 = vmatmul.mubr.f32.gmra.mrb[0].mxu0 %v1295
        %v1494 = vpop.f32.mrb[0].mxu0
        %v1495 = vadd.f32 0.0, %v1494
        %v1496 = vpop.f32.mrb[0].mxu0
        %1497 = vmatprep.mubr.f32.mxu0 %v1298
        %1498 = vmatmul.mubr.f32.gmra.mrb[0].mxu0 %v1297
        %v1499 = vpop.f32.mrb[0].mxu0
        %v1500 = vadd.f32 0.0, %v1499
        %v1501 = vpop.f32.mrb[0].mxu0
        %1502 = vmatprep.mubr.f32.mxu0 %v1300
        %1503 = vmatmul.mubr.f32.gmra.mrb[0].mxu0 %v1299
        %v1504 = vpop.f32.mrb[0].mxu0
        %v1505 = vadd.f32 0.0, %v1504
        %v1506 = vpop.f32.mrb[0].mxu0
        %1507 = vmatprep.mubr.f32.mxu0 %v1302
        %1508 = vmatmul.mubr.f32.gmra.mrb[0].mxu0 %v1301
        %v1509 = vpop.f32.mrb[0].mxu0
        %v1510 = vadd.f32 0.0, %v1509
        %v1511 = vpop.f32.mrb[0].mxu0
        %1512 = vmatprep.mubr.f32.mxu0 %v1304
        %1513 = vmatmul.mubr.f32.gmra.mrb[0].mxu0 %v1303
        %v1514 = vpop.f32.mrb[0].mxu0
        %v1515 = vadd.f32 0.0, %v1514
        %v1516 = vpop.f32.mrb[0].mxu0
        %1517 = vmatprep.mubr.f32.mxu0 %v1306
        %1518 = vmatmul.mubr.f32.gmra.mrb[0].mxu0 %v1305
        %v1519 = vpop.f32.mrb[0].mxu0
        %v1520 = vadd.f32 0.0, %v1519
        %v1521 = vpop.f32.mrb[0].mxu0
        %1522 = vmatprep.mubr.f32.mxu0 %v1308
        %1523 = vmatmul.mubr.f32.gmra.mrb[0].mxu0 %v1307
        %v1524 = vpop.f32.mrb[0].mxu0
        %v1525 = vadd.f32 0.0, %v1524
        %v1526 = vpop.f32.mrb[0].mxu0
        %1527 = vmatprep.mubr.f32.mxu0 %v1310
        %1528 = vmatmul.mubr.f32.gmra.mrb[0].mxu0 %v1309
        %v1529 = vpop.f32.mrb[0].mxu0
        %v1530 = vadd.f32 0.0, %v1529
        %v1531 = vpop.f32.mrb[0].mxu0
        %1532 = vmatprep.mubr.f32.mxu0 %v1312
        %1533 = vmatmul.mubr.f32.gmra.mrb[0].mxu0 %v1311
        %v1534 = vpop.f32.mrb[0].mxu0
        %v1535 = vadd.f32 0.0, %v1534
        %v1536 = vpop.f32.mrb[0].mxu0
        %1537 = vdwg.mxu0
        %1538 = vst [vmem:[%s278] sm:$0xff] %v1380
        %1539 = vst [vmem:[%s278 + $0x8] sm:$0xff] %v1385
        %1540 = vst [vmem:[%s278 + $0x10] sm:$0xff] %v1390
        %1541 = vst [vmem:[%s278 + $0x18] sm:$0xff] %v1395
        %1542 = vst [vmem:[%s278 + $0x20] sm:$0xff] %v1400
        %1543 = vst [vmem:[%s278 + $0x28] sm:$0xff] %v1405
        %1544 = vst [vmem:[%s278 + $0x30] sm:$0xff] %v1410
        %1545 = vst [vmem:[%s278 + $0x38] sm:$0xff] %v1415
        %1546 = vst [vmem:[%s278 + $0x40] sm:$0xff] %v1420
        %1547 = vst [vmem:[%s278 + $0x48] sm:$0xff] %v1425
        %1548 = vst [vmem:[%s278 + $0x50] sm:$0xff] %v1430
        %1549 = vst [vmem:[%s278 + $0x58] sm:$0xff] %v1435
        %1550 = vst [vmem:[%s278 + $0x60] sm:$0xff] %v1440
        %1551 = vst [vmem:[%s278 + $0x68] sm:$0xff] %v1445
        %1552 = vst [vmem:[%s278 + $0x70] sm:$0xff] %v1450
        %1553 = vst [vmem:[%s278 + $0x78] sm:$0xff] %v1455
        %1554 = vst [vmem:[%s278 + $0x80] sm:$0xff] %v1460
        %1555 = vst [vmem:[%s278 + $0x88] sm:$0xff] %v1465
        %1556 = vst [vmem:[%s278 + $0x90] sm:$0xff] %v1470
        %1557 = vst [vmem:[%s278 + $0x98] sm:$0xff] %v1475
        %1558 = vst [vmem:[%s278 + $0xa0] sm:$0xff] %v1480
        %1559 = vst [vmem:[%s278 + $0xa8] sm:$0xff] %v1485
        %1560 = vst [vmem:[%s278 + $0xb0] sm:$0xff] %v1490
        %1561 = vst [vmem:[%s278 + $0xb8] sm:$0xff] %v1495
        %1562 = vst [vmem:[%s278 + $0xc0] sm:$0xff] %v1500
        %1563 = vst [vmem:[%s278 + $0xc8] sm:$0xff] %v1505
        %1564 = vst [vmem:[%s278 + $0xd0] sm:$0xff] %v1510
        %1565 = vst [vmem:[%s278 + $0xd8] sm:$0xff] %v1515
        %1566 = vst [vmem:[%s278 + $0xe0] sm:$0xff] %v1520
        %1567 = vst [vmem:[%s278 + $0xe8] sm:$0xff] %v1525
        %1568 = vst [vmem:[%s278 + $0xf0] sm:$0xff] %v1530
        %1569 = vst [vmem:[%s278 + $0xf8] sm:$0xff] %v1535
        %v1570 = vld [vmem:[%s273] sm:$0x3]
        %v1572 = vlaneseq
        %v1573 = vshrl.u32 %v1572, 7
        %v1574 = vsub.s32 0, %v1573
        %v1575 = vrot.slane %v1570, %v1574
        %v1576 = vlaneseq
        %v1577 = vshrl.u32 %v1576, 7
        %v1578 = vsub.s32 1, %v1577
        %v1579 = vrot.slane %v1570, %v1578
        %1582 = vmatprep.subr.mxu0 0.0
        %1583 = vmatpush1.msra.mxu0 %v1380
        %1584 = vmatprep.subr.mxu0 0.0
        %1585 = vmatpush1.msra.mxu0 %v1385
        %1586 = vmatprep.subr.mxu0 0.0
        %1587 = vmatpush1.msra.mxu0 %v1390
        %1588 = vmatprep.subr.mxu0 0.0
        %1589 = vmatpush1.msra.mxu0 %v1395
        %1590 = vmatprep.subr.mxu0 0.0
        %1591 = vmatpush1.msra.mxu0 %v1400
        %1592 = vmatprep.subr.mxu0 0.0
        %1593 = vmatpush1.msra.mxu0 %v1405
        %1594 = vmatprep.subr.mxu0 0.0
        %1595 = vmatpush1.msra.mxu0 %v1410
        %1596 = vmatprep.subr.mxu0 0.0
        %1597 = vmatpush1.msra.mxu0 %v1415
        %1598 = vmatprep.subr.mxu0 0.0
        %1599 = vmatpush1.msra.mxu0 %v1420
        %1600 = vmatprep.subr.mxu0 0.0
        %1601 = vmatpush1.msra.mxu0 %v1425
        %1602 = vmatprep.subr.mxu0 0.0
        %1603 = vmatpush1.msra.mxu0 %v1430
        %1604 = vmatprep.subr.mxu0 0.0
        %1605 = vmatpush1.msra.mxu0 %v1435
        %1606 = vmatprep.subr.mxu0 0.0
        %1607 = vmatpush1.msra.mxu0 %v1440
        %1608 = vmatprep.subr.mxu0 0.0
        %1609 = vmatpush1.msra.mxu0 %v1445
        %1610 = vmatprep.subr.mxu0 0.0
        %1611 = vmatpush1.msra.mxu0 %v1450
        %1612 = vmatprep.subr.mxu0 0.0
        %1613 = vmatpush1.msra.mxu0 %v1455
        %1614 = vmatprep.subr.mxu0 0.0
        %1615 = vmatpush1.msra.mxu0 %v1460
        %1616 = vmatprep.subr.mxu0 0.0
        %1617 = vmatpush1.msra.mxu0 %v1465
        %1618 = vmatprep.subr.mxu0 0.0
        %1619 = vmatpush1.msra.mxu0 %v1470
        %1620 = vmatprep.subr.mxu0 0.0
        %1621 = vmatpush1.msra.mxu0 %v1475
        %1622 = vmatprep.subr.mxu0 0.0
        %1623 = vmatpush1.msra.mxu0 %v1480
        %1624 = vmatprep.subr.mxu0 0.0
        %1625 = vmatpush1.msra.mxu0 %v1485
        %1626 = vmatprep.subr.mxu0 0.0
        %1627 = vmatpush1.msra.mxu0 %v1490
        %1628 = vmatprep.subr.mxu0 0.0
        %1629 = vmatpush1.msra.mxu0 %v1495
        %1630 = vmatprep.subr.mxu0 0.0
        %1631 = vmatpush1.msra.mxu0 %v1500
        %1632 = vmatprep.subr.mxu0 0.0
        %1633 = vmatpush1.msra.mxu0 %v1505
        %1634 = vmatprep.subr.mxu0 0.0
        %1635 = vmatpush1.msra.mxu0 %v1510
        %1636 = vmatprep.subr.mxu0 0.0
        %1637 = vmatpush1.msra.mxu0 %v1515
        %1638 = vmatprep.subr.mxu0 0.0
        %1639 = vmatpush1.msra.mxu0 %v1520
        %1640 = vmatprep.subr.mxu0 0.0
        %1641 = vmatpush1.msra.mxu0 %v1525
        %1642 = vmatprep.subr.mxu0 0.0
        %1643 = vmatpush1.msra.mxu0 %v1530
        %1644 = vmatprep.subr.mxu0 0.0
        %1645 = vmatpush1.msra.mxu0 %v1535
        %1646 = vmatprep.mubr.f32.mxu0 %v1579
        %1647 = vmatmul.mubr.f32.gmra.mrb[0].mxu0 %v1575
        %v1648 = vpop.f32.mrb[0].mxu0
        %v1649 = vadd.f32 0.0, %v1648
        %v1650 = vpop.f32.mrb[0].mxu0
        %1651 = vdwg.mxu0
        %v1652 = vmul.f32 %v1649, %v1649
        %vm1653 = vcmask 1040384
        %v1654 = vsel %vm1653, %v1652, 0.0
        %1655 = vadd.xlane.f32.xlu0 %v1654
        %v1656 = vpop.xlane.xlu0 %1655
        %v1657 = vrsqrt.pop %v1656
        %v1658 = vmul.f32 %v1656, %v1657
        %vm1659 = vcmp.eq.f32.partialorder %v1656, inf
        %v1660 = vsel %vm1659, %v1656, %v1658
        %vm1661 = vcmp.eq.f32.partialorder %v1656, 0.0
        %v1662 = vand.u32 %v1656, 2147483648
        %v1663 = vsel %vm1661, %v1662, %v1660
        %v1664 = vadd.f32 %v1663, 1e-06
        %v1665 = vrcp.pop %v1664
        %v1666 = vmul.f32 %v1649, %v1665
        %1667 = vst [vmem:[%s264] sm:$0x1] %v1666
        %p1668 = scmp.lt.s32.totalorder %s21, 1
        %s1669 = scalar_select %p1668, %s21, 1
        %s1670 = smul.addr %s1669, 32
        %s1671 = smul.addr %s1670, 8
        %s1672 = scalar_lea.vmem %s5, %s1671
        %s1673 = sand.u32 %s170, 1
        %s1674 = scalar_lea.sflag [#allocation3], %s1673
        %s1675 = sand.u32 %s170, 1
        %s1676 = scalar_lea.vmem [#allocation2], %s1675
        // Predicated region
        $region41: #{hownet_forward.1} parent=39 // pred_check
          %p1677 = pneg %p154
        $region42: #{hownet_forward.1} parent=39 // pred_check_branch
          %1679 = sbr.rel (%p1677) target = $region44
        $region43: #{hownet_forward.1} parent=39 // pred_region
          _
        $region44: #{hownet_forward.1} parent=39 // pred_fallthru
          _
        // Predicated region
        $region45: #{hownet_forward.1} parent=39 // pred_check
          %p1680 = pneg %p180
        $region46: #{hownet_forward.1} parent=39 // pred_check_branch
          %1682 = sbr.rel (%p1680) target = $region48
        $region47: #{hownet_forward.1} parent=39 // pred_region
          %s1684 = ssub.s32 16, 16
          %1685 = vsyncadd %s1674, %s1684
          %s1686 = smul.addr %s21, 16
          %s1687 = scalar_lea.hbm %s6, %s1686
          %s1689 = sshll.u32 %s1676, 4
          %s1690 = int_to_ptr.vmem [resolvable:$true] %s1689
          %1692 = dma.vmem_to_hbm [thread:$0]  %s1690, 16, %s1687, %s1674
        $region48: #{hownet_forward.1} parent=39 // pred_fallthru
          _
      $region40: #{hownet_forward.1} parent=5 // pred_fallthru
        _
      %p1693 = scmp.le.s32.totalorder 2, %s16
      // Predicated region
      $region49: #{hownet_forward.1} parent=5 // pred_check
        %p1694 = pneg %p1693
      $region50: #{hownet_forward.1} parent=5 // pred_check_branch
        %1696 = sbr.rel (%p1694) target = $region52
      $region51: #{hownet_forward.1} parent=5 // pred_region
        %s1697 = ssub.s32 %s16, 2
        // Predicated region
        $region53: #{hownet_forward.1} parent=51 // pred_check
          %p1698 = pneg %p160
        $region54: #{hownet_forward.1} parent=51 // pred_check_branch
          %1700 = sbr.rel (%p1698) target = $region56
        $region55: #{hownet_forward.1} parent=51 // pred_region
          %p1701 = scmp.lt.s32.totalorder %s22, 1
          %s1702 = scalar_select %p1701, %s22, 1
          %s1703 = smul.addr %s1702, 32
          %s1704 = smul.addr %s1703, 8
          %s1705 = scalar_lea.vmem %s5, %s1704
        $region56: #{hownet_forward.1} parent=51 // pred_fallthru
          _
        // Predicated region
        $region57: #{hownet_forward.1} parent=51 // pred_check
          %p1706 = pneg %p186
        $region58: #{hownet_forward.1} parent=51 // pred_check_branch
          %1708 = sbr.rel (%p1706) target = $region60
        $region59: #{hownet_forward.1} parent=51 // pred_region
          %s1709 = sand.u32 %s171, 1
          %s1710 = scalar_lea.sflag [#allocation3], %s1709
          %s1711 = sand.u32 %s171, 1
          %s1712 = scalar_lea.vmem [#allocation2], %s1711
          %1713 = dma.done %s1710, 16
        $region60: #{hownet_forward.1} parent=51 // pred_fallthru
          _
      $region52: #{hownet_forward.1} parent=5 // pred_fallthru
        _
    $region6: #{hownet_forward.1} parent=1 // loop_footer
      %s20 = sadd.s32 1, %s16
    $region7: #{hownet_forward.1} parent=1 // loop_footer_branch
      %15 = sbr.rel target = $region3
    $region8: #{hownet_forward.1} parent=1 // loop_exit
      _
    %1714 = vsyncpa [#allocation3], 1
    %s1715 = scalar_lea.sflag [#allocation3], 1
    %1716 = vsyncpa %s1715, 1

</llo_original>
